<compile_context>
chip_gen: v7x
topology: tpu7x:2x2x1
jax: 0.10.0
libtpu: 0.0.40
codegen_flags: <defaults>
</compile_context>

<pallas_src>
import math
from functools import partial

import jax
import jax.numpy as jnp
from jax.experimental import pallas as pl
from jax.experimental.pallas import tpu as pltpu


# ----------------------------------------------------------------- helpers ---

def _round_up(v, m):
    return (v + m - 1) // m * m


def _vmem_capacity_bytes():
    """Per-core VMEM capacity; conservative 64 MiB (v7x-sized) fallback."""
    try:
        return int(pltpu.get_tpu_info().vmem_capacity_bytes)
    except Exception:
        return 64 << 20


def _const_block_spec(shape):
    """BlockSpec for a grid-constant operand (weights / LN params / biases).

    pipeline_mode=pl.Buffered(1) drops the unused second pipeline buffer
    (constant index map -> DMA'd only once).  Falls back to a plain spec if the
    running JAX does not expose pipeline_mode / Buffered.
    """
    index_map = lambda n: (0,) * len(shape)
    try:
        return pl.BlockSpec(shape, index_map, pipeline_mode=pl.Buffered(1))
    except Exception:
        return pl.BlockSpec(shape, index_map)


# ------------------------------------------------------------------ kernel ---

def _sattention_kernel(
    x_ref,                                # (T, nb*D) lane-packed batch chunk
    wq_ref, wk_ref, wv_ref,               # (D, D) matmul_dtype; Wq pre-scaled by 1/temp
    g1_ref, b1_ref, g2_ref, b2_ref,       # (1, D) f32 LayerNorm gamma/beta
    wf1_ref, bf1_ref, wf2_ref, bf2_ref,   # FFN: (D, D), (1, D), (D, D), (1, D)
    o_ref,                                # (T, nb*D) output block
    *, d_model, nhead, nb, softmax_dtype,
):
    f32 = jnp.float32
    eps = 1e-5
    D = d_model
    dim = D // nhead
    T = x_ref.shape[0]
    md = wq_ref.dtype                      # matmul operand dtype (pre-cast weights)

    def layer_norm(z, g, b):
        mu = jnp.mean(z, axis=-1, keepdims=True)
        var = jnp.mean(jnp.square(z - mu), axis=-1, keepdims=True)
        return (z - mu) * jax.lax.rsqrt(var + eps) * g + b

    # ---- the single input relayout: lane-packed batches -> batch-major rows ----
    x_all = x_ref[...].astype(f32)                                   # (T, nb*D)
    if nb == 1:
        x_rows = x_all                                               # (T, D)
    else:
        x_rows = jnp.concatenate(
            [x_all[:, j * D:(j + 1) * D] for j in range(nb)], axis=0)  # (nb*T, D)

    # ---- norm1 (f32) ----
    xn = layer_norm(x_rows, g1_ref[0], b1_ref[0])                    # (nb*T, D)

    # ---- fused Q/K/V projections: M = nb*T rows per MXU matmul, f32 accumulate ----
    xn_m = xn.astype(md)
    q = jnp.dot(xn_m, wq_ref[...], preferred_element_type=f32)       # (nb*T, D)
    k = jnp.dot(xn_m, wk_ref[...], preferred_element_type=f32)
    v = jnp.dot(xn_m, wv_ref[...], preferred_element_type=f32)

    # ---- attention: free leading-dim split (T % 8 == 0), heads stay lane-packed;
    #      per head one nb-batched score matmul + softmax + one nb-batched PV matmul ----
    qb = q.reshape(nb, T, D).astype(md)
    kb = k.reshape(nb, T, D).astype(md)
    vb = v.reshape(nb, T, D).astype(md)

    head_outs = []
    for h in range(nhead):
        lo = h * dim
        qh = qb[:, :, lo:lo + dim]                                    # (nb, T, dim)
        kh = kb[:, :, lo:lo + dim]
        vh = vb[:, :, lo:lo + dim]
        s = jnp.einsum("ntd,nsd->nts", qh, kh,
                       preferred_element_type=f32)                    # (nb, T, T)
        s = s - jnp.max(s, axis=-1, keepdims=True)
        # softmax_dtype=bfloat16 doubles EUP throughput on v6e/v7x; keep f32 on v5e.
        p = jnp.exp(s.astype(softmax_dtype)).astype(f32)
        p = p * (1.0 / jnp.sum(p, axis=-1, keepdims=True))            # exact reciprocal
        # TODO(synk): attention dropout is identity (eval mode).
        head_outs.append(
            jnp.einsum("nts,nsd->ntd", p.astype(md), vh,
                       preferred_element_type=f32))                   # (nb, T, dim)
    att_b = head_outs[0] if nhead == 1 else jnp.concatenate(head_outs, axis=-1)
    att = att_b.reshape(nb * T, D)                                    # (nb*T, D)

    # ---- residual on the norm1 output (as in the PyTorch module) + norm2 ----
    xt = layer_norm(xn + att, g2_ref[0], b2_ref[0])                   # (nb*T, D)

    # ---- FFN: Linear -> ReLU -> Linear (dropouts identity in eval) ----
    xt_m = xt.astype(md)
    h1 = jnp.maximum(
        jnp.dot(xt_m, wf1_ref[...], preferred_element_type=f32) + bf1_ref[0], 0.0)
    y = jnp.dot(h1.astype(md), wf2_ref[...], preferred_element_type=f32) + bf2_ref[0]
    y = xt + y                                                        # (nb*T, D)

    # ---- write per-batch lane slabs directly (no output concat / repack) ----
    if nb == 1:
        o_ref[...] = y.astype(o_ref.dtype)
    else:
        for j in range(nb):
            o_ref[:, j * D:(j + 1) * D] = y[j * T:(j + 1) * T, :].astype(o_ref.dtype)


# ------------------------------------------------------------- tile picker ---

def _vmem_bytes_estimate(T, nb, D, nhead, mdbytes):
    """Rough per-step VMEM bound for the kernel at batch-chunk nb (f32 activations)."""
    f32b = 4
    Dp = _round_up(D, 128)
    dim = D // nhead
    dimp = _round_up(dim, 128)
    Tp = _round_up(T, 128)
    T8 = _round_up(T, 8)
    rows8 = _round_up(nb * T, 8)
    nbD_p = _round_up(nb * D, 128)

    io = 2 * 2 * T8 * nbD_p * f32b                 # in + out blocks, double-buffered
    rows_f32 = 7 * rows8 * Dp * f32b               # x_rows, xn, q, k, v, xt, y live set
    rows_md = 4 * rows8 * Dp * mdbytes             # xn_m + qb/kb/vb operand casts
    per_head = (3 * nb * T8 * dimp * mdbytes       # qh/kh/vh (one head live, lane-padded)
                + 2 * nb * T8 * Tp * f32b)         # scores + probs (one head live)
    head_out = nhead * nb * T8 * dimp * f32b       # accumulated per-head outputs
    weights = 5 * _round_up(D, 8) * Dp * mdbytes   # single-buffered weight blocks
    vecs = 2 * 6 * 8 * Dp * f32b                   # LN / bias vectors
    return io + rows_f32 + rows_md + per_head + head_out + weights + vecs


def _pick_nb(T, N, D, nhead, mdbytes, budget_bytes):
    """Batch elements per grid step.

    Legal blocks ((8,128) rule on the (T, nb*D) block): nb == N, or N % nb == 0
    with (nb*D) % 128 == 0.  Preference order:
      1. fits the per-generation VMEM budget,
      2. >= 2 grid steps (v7x megacore sharding + DMA/compute overlap),
      3. largest tile that fits (amortize ~0.35us/step, fill the MXU M dim).
    """
    cands = [nb for nb in range(1, N + 1)
             if N % nb == 0 and (nb == N or (nb * D) % 128 == 0)]
    fits = [nb for nb in cands
            if _vmem_bytes_estimate(T, nb, D, nhead, mdbytes) <= budget_bytes]
    if not fits:
        # best effort; see the flash-attention TODO for very large T
        return min(cands)
    multi = [nb for nb in fits if N // nb >= 2]
    pool = multi if multi else fits
    return max(pool)


# ----------------------------------------------------------------- wrapper ---

def sattention_forward(x, params, *, d_model, nhead,
                       matmul_dtype=jnp.bfloat16, softmax_dtype=jnp.float32):
    """x: (T, N, D) float32.  Returns (T, N, D)."""
    T, N, D = x.shape
    assert D == d_model
    assert D % nhead == 0, "fused kernel assumes equal head widths (d_model % nhead == 0)"
    assert (T % 8 == 0) or (N == 1), "batched row fusion needs seq_len % 8 == 0 (pad T)"

    md = jnp.dtype(matmul_dtype)
    temperature = math.sqrt(d_model / nhead)

    vmem_cap = _vmem_capacity_bytes()
    budget = int(vmem_cap * 0.70)                  # headroom for compiler scratch/spills
    nb = _pick_nb(T, N, D, nhead, md.itemsize, budget)
    grid = (N // nb,)

    # Pre-scale and pre-cast weights once in the wrapper (halves weight DMA bytes
    # and VMEM; removes per-step casts on constant blocks).  1/temperature folded
    # into Wq for free.
    wq = (params["wq"] / temperature).astype(md)
    wk = params["wk"].astype(md)
    wv = params["wv"].astype(md)
    wf1 = params["ffn_w1"].astype(md)
    wf2 = params["ffn_w2"].astype(md)

    # Free row-major reshape (no HBM transpose / copy): (T, N, D) -> (T, N*D).
    x2d = x.reshape(T, N * D)

    io_spec = pl.BlockSpec((T, nb * D), lambda n: (0, n))
    mat_spec = _const_block_spec((D, D))
    vec_spec = _const_block_spec((1, D))

    head_dim = D // nhead
    rows = T * N
    cost = pl.CostEstimate(
        flops=int(10 * rows * D * D + 4 * N * nhead * T * T * head_dim),
        transcendentals=int(N * nhead * T * T),
        bytes_accessed=int(4 * 2 * rows * D + md.itemsize * 5 * D * D + 4 * 12 * D),
    )

    out2d = pl.pallas_call(
        partial(_sattention_kernel, d_model=D, nhead=nhead, nb=nb,
                softmax_dtype=softmax_dtype),
        out_shape=jax.ShapeDtypeStruct((T, N * D), x.dtype),
        grid_spec=pltpu.PrefetchScalarGridSpec(
            num_scalar_prefetch=0,
            grid=grid,
            in_specs=[
                io_spec,                                   # x (lane-packed batch chunk)
                mat_spec, mat_spec, mat_spec,              # Wq (pre-scaled), Wk, Wv
                vec_spec, vec_spec, vec_spec, vec_spec,    # ln1 w/b, ln2 w/b
                mat_spec, vec_spec, mat_spec, vec_spec,    # ffn W1, b1, W2, b2
            ],
            out_specs=io_spec,
        ),
        compiler_params=pltpu.CompilerParams(
            dimension_semantics=("parallel",),
            vmem_limit_bytes=int(vmem_cap * 0.85),
        ),
        cost_estimate=cost,
    )(
        x2d,
        wq, wk, wv,
        params["ln1_w"], params["ln1_b"], params["ln2_w"], params["ln2_b"],
        wf1, params["ffn_b1"], wf2, params["ffn_b2"],
    )
    return out2d.reshape(T, N, D)          # free reshape back, no transpose


# --------------------------------------------------------------- reference ---

def sattention_reference(x, params, *, d_model, nhead):
    """Pure-JAX reference mirroring the PyTorch forward (eval mode)."""
    eps = 1e-5
    dim = d_model // nhead
    temperature = math.sqrt(d_model / nhead)

    def ln(z, w, b):
        mu = jnp.mean(z, axis=-1, keepdims=True)
        var = jnp.mean((z - mu) ** 2, axis=-1, keepdims=True)
        return (z - mu) / jnp.sqrt(var + eps) * w[0] + b[0]

    xn = ln(x, params["ln1_w"], params["ln1_b"])
    q = jnp.swapaxes(xn @ params["wq"], 0, 1)
    k = jnp.swapaxes(xn @ params["wk"], 0, 1)
    v = jnp.swapaxes(xn @ params["wv"], 0, 1)
    outs = []
    for h in range(nhead):
        lo = h * dim
        hi = d_model if h == nhead - 1 else (h + 1) * dim
        qh, kh, vh = q[:, :, lo:hi], k[:, :, lo:hi], v[:, :, lo:hi]
        s = jnp.einsum("ntd,nsd->nts", qh, kh) / temperature
        p = jax.nn.softmax(s, axis=-1)
        outs.append(jnp.swapaxes(jnp.einsum("nts,nsd->ntd", p, vh), 0, 1))
    att = jnp.concatenate(outs, axis=-1)
    xt = ln(xn + att, params["ln2_w"], params["ln2_b"])
    h1 = jnp.maximum(xt @ params["ffn_w1"] + params["ffn_b1"][0], 0.0)
    ffn = h1 @ params["ffn_w2"] + params["ffn_b2"][0]
    return xt + ffn


def make_params(key, d_model):
    ks = jax.random.split(key, 6)
    scale = 1.0 / math.sqrt(d_model)
    D = d_model
    return {
        "wq": jax.random.uniform(ks[0], (D, D), jnp.float32, -scale, scale),
        "wk": jax.random.uniform(ks[1], (D, D), jnp.float32, -scale, scale),
        "wv": jax.random.uniform(ks[2], (D, D), jnp.float32, -scale, scale),
        "ln1_w": jnp.ones((1, D), jnp.float32),
        "ln1_b": jnp.zeros((1, D), jnp.float32),
        "ln2_w": jnp.ones((1, D), jnp.float32),
        "ln2_b": jnp.zeros((1, D), jnp.float32),
        "ffn_w1": jax.random.uniform(ks[3], (D, D), jnp.float32, -scale, scale),
        "ffn_b1": jax.random.uniform(ks[4], (1, D), jnp.float32, -scale, scale),
        "ffn_w2": jax.random.uniform(ks[5], (D, D), jnp.float32, -scale, scale),
        "ffn_b2": jnp.zeros((1, D), jnp.float32),
    }


if __name__ == "__main__":
    d_model, nhead = 32, 4
    T, N = 8, 2  # (seq_len, batch)

    key = jax.random.PRNGKey(0)
    kx, kp = jax.random.split(key)
    x = jax.random.normal(kx, (T, N, d_model), jnp.float32)
    params = make_params(kp, d_model)

    ref = sattention_reference(x, params, d_model=d_model, nhead=nhead)

    # f32-operand MXU path (exact softmax reciprocal): tighter check.
    out_f32 = jax.block_until_ready(
        sattention_forward(x, params, d_model=d_model, nhead=nhead,
                           matmul_dtype=jnp.float32))
    assert out_f32.shape == (T, N, d_model)
    assert jnp.allclose(out_f32, ref, atol=1e-2, rtol=1e-2), \
        f"f32 mismatch: {float(jnp.max(jnp.abs(out_f32 - ref)))}"

    # Default bf16-operand MXU path (the perf configuration): looser check
    # (bf16 operand rounding; accumulation stays f32).
    out_bf16 = jax.block_until_ready(
        sattention_forward(x, params, d_model=d_model, nhead=nhead))
    assert out_bf16.shape == (T, N, d_model)
    assert jnp.allclose(out_bf16, ref, atol=1e-1, rtol=1e-1), \
        f"bf16 mismatch: {float(jnp.max(jnp.abs(out_bf16 - ref)))}"

    print("KERNEL_OK")
</pallas_src>

<mosaic_0001>
module attributes {stable_mosaic.version = 11 : i64} {
  func.func @_sattention_kernel(%arg0: i32, %arg1: memref<8x64xf32, #tpu.memory_space<vmem>>, %arg2: memref<32x32xf32, #tpu.memory_space<vmem>>, %arg3: memref<32x32xf32, #tpu.memory_space<vmem>>, %arg4: memref<32x32xf32, #tpu.memory_space<vmem>>, %arg5: memref<1x32xf32, #tpu.memory_space<vmem>>, %arg6: memref<1x32xf32, #tpu.memory_space<vmem>>, %arg7: memref<1x32xf32, #tpu.memory_space<vmem>>, %arg8: memref<1x32xf32, #tpu.memory_space<vmem>>, %arg9: memref<32x32xf32, #tpu.memory_space<vmem>>, %arg10: memref<1x32xf32, #tpu.memory_space<vmem>>, %arg11: memref<32x32xf32, #tpu.memory_space<vmem>>, %arg12: memref<1x32xf32, #tpu.memory_space<vmem>>, %arg13: memref<8x64xf32, #tpu.memory_space<vmem>>) attributes {dimension_semantics = [#tpu.dimension_semantics<parallel>], iteration_bounds = array<i64: 1>, scalar_prefetch = 0 : i64, scratch_operands = 0 : i64, tpu.core_type = #tpu.core_type<tc>, window_params = [{transform_indices = @transform_0, window_bounds = array<i64: 8, 64>}, {pipeline_mode = #tpu.pipeline_mode<synchronous>, transform_indices = @transform_1, window_bounds = array<i64: 32, 32>}, {pipeline_mode = #tpu.pipeline_mode<synchronous>, transform_indices = @transform_2, window_bounds = array<i64: 32, 32>}, {pipeline_mode = #tpu.pipeline_mode<synchronous>, transform_indices = @transform_3, window_bounds = array<i64: 32, 32>}, {pipeline_mode = #tpu.pipeline_mode<synchronous>, transform_indices = @transform_4, window_bounds = array<i64: 1, 32>}, {pipeline_mode = #tpu.pipeline_mode<synchronous>, transform_indices = @transform_5, window_bounds = array<i64: 1, 32>}, {pipeline_mode = #tpu.pipeline_mode<synchronous>, transform_indices = @transform_6, window_bounds = array<i64: 1, 32>}, {pipeline_mode = #tpu.pipeline_mode<synchronous>, transform_indices = @transform_7, window_bounds = array<i64: 1, 32>}, {pipeline_mode = #tpu.pipeline_mode<synchronous>, transform_indices = @transform_8, window_bounds = array<i64: 32, 32>}, {pipeline_mode = #tpu.pipeline_mode<synchronous>, transform_indices = @transform_9, window_bounds = array<i64: 1, 32>}, {pipeline_mode = #tpu.pipeline_mode<synchronous>, transform_indices = @transform_10, window_bounds = array<i64: 32, 32>}, {pipeline_mode = #tpu.pipeline_mode<synchronous>, transform_indices = @transform_11, window_bounds = array<i64: 1, 32>}, {transform_indices = @transform_12, window_bounds = array<i64: 8, 64>}]} {
    %c0 = arith.constant 0 : index
    %c0_0 = arith.constant 0 : index
    %0 = vector.load %arg1[%c0, %c0_0] : memref<8x64xf32, #tpu.memory_space<vmem>>, vector<8x64xf32>
    %1 = vector.extract_strided_slice %0 {offsets = [0, 0], sizes = [8, 32], strides = [1, 1]} : vector<8x64xf32> to vector<8x32xf32>
    %2 = vector.extract_strided_slice %0 {offsets = [0, 32], sizes = [8, 32], strides = [1, 1]} : vector<8x64xf32> to vector<8x32xf32>
    %3 = tpu.concatenate %1, %2 in 0 : vector<8x32xf32>, vector<8x32xf32> -> vector<16x32xf32>
    %c0_1 = arith.constant 0 : index
    %c0_2 = arith.constant 0 : index
    %4 = vector.load %arg5[%c0_1, %c0_2] : memref<1x32xf32, #tpu.memory_space<vmem>>, vector<1x32xf32>
    %5 = vector.shape_cast %4 : vector<1x32xf32> to vector<32xf32>
    %c0_3 = arith.constant 0 : index
    %c0_4 = arith.constant 0 : index
    %6 = vector.load %arg6[%c0_3, %c0_4] : memref<1x32xf32, #tpu.memory_space<vmem>>, vector<1x32xf32>
    %7 = vector.shape_cast %6 : vector<1x32xf32> to vector<32xf32>
    %cst = arith.constant dense<0.000000e+00> : vector<16xf32>
    %8 = vector.multi_reduction <add>, %3, %cst [1] : vector<16x32xf32> to vector<16xf32>
    %9 = vector.shape_cast %8 : vector<16xf32> to vector<16x1xf32>
    %cst_5 = arith.constant 3.200000e+01 : f32
    %10 = vector.broadcast %cst_5 : f32 to vector<16x1xf32>
    %11 = arith.divf %9, %10 : vector<16x1xf32>
    %12 = vector.broadcast %11 : vector<16x1xf32> to vector<16x32xf32>
    %13 = arith.subf %3, %12 : vector<16x32xf32>
    %14 = arith.mulf %13, %13 : vector<16x32xf32>
    %cst_6 = arith.constant dense<0.000000e+00> : vector<16xf32>
    %15 = vector.multi_reduction <add>, %14, %cst_6 [1] : vector<16x32xf32> to vector<16xf32>
    %16 = vector.shape_cast %15 : vector<16xf32> to vector<16x1xf32>
    %cst_7 = arith.constant 3.200000e+01 : f32
    %17 = vector.broadcast %cst_7 : f32 to vector<16x1xf32>
    %18 = arith.divf %16, %17 : vector<16x1xf32>
    %19 = vector.broadcast %11 : vector<16x1xf32> to vector<16x32xf32>
    %20 = arith.subf %3, %19 : vector<16x32xf32>
    %cst_8 = arith.constant 9.99999974E-6 : f32
    %21 = vector.broadcast %cst_8 : f32 to vector<16x1xf32>
    %22 = arith.addf %18, %21 : vector<16x1xf32>
    %23 = math.rsqrt %22 : vector<16x1xf32>
    %24 = vector.broadcast %23 : vector<16x1xf32> to vector<16x32xf32>
    %25 = arith.mulf %20, %24 : vector<16x32xf32>
    %26 = vector.shape_cast %5 : vector<32xf32> to vector<1x32xf32>
    %27 = vector.broadcast %26 : vector<1x32xf32> to vector<16x32xf32>
    %28 = arith.mulf %25, %27 : vector<16x32xf32>
    %29 = vector.shape_cast %7 : vector<32xf32> to vector<1x32xf32>
    %30 = vector.broadcast %29 : vector<1x32xf32> to vector<16x32xf32>
    %31 = arith.addf %28, %30 : vector<16x32xf32>
    %c0_9 = arith.constant 0 : index
    %c0_10 = arith.constant 0 : index
    %32 = vector.load %arg2[%c0_9, %c0_10] : memref<32x32xf32, #tpu.memory_space<vmem>>, vector<32x32xf32>
    %cst_11 = arith.constant dense<0.000000e+00> : vector<16x32xf32>
    %33 = tpu.matmul %31, %32, %cst_11 {dimension_numbers = #tpu.dot_dimension_numbers<[1], [0], [0], [1], [0, 0, 1, 1], [], []>} : vector<16x32xf32>, vector<32x32xf32>, vector<16x32xf32> -> vector<16x32xf32>
    %c0_12 = arith.constant 0 : index
    %c0_13 = arith.constant 0 : index
    %34 = vector.load %arg3[%c0_12, %c0_13] : memref<32x32xf32, #tpu.memory_space<vmem>>, vector<32x32xf32>
    %cst_14 = arith.constant dense<0.000000e+00> : vector<16x32xf32>
    %35 = tpu.matmul %31, %34, %cst_14 {dimension_numbers = #tpu.dot_dimension_numbers<[1], [0], [0], [1], [0, 0, 1, 1], [], []>} : vector<16x32xf32>, vector<32x32xf32>, vector<16x32xf32> -> vector<16x32xf32>
    %c0_15 = arith.constant 0 : index
    %c0_16 = arith.constant 0 : index
    %36 = vector.load %arg4[%c0_15, %c0_16] : memref<32x32xf32, #tpu.memory_space<vmem>>, vector<32x32xf32>
    %cst_17 = arith.constant dense<0.000000e+00> : vector<16x32xf32>
    %37 = tpu.matmul %31, %36, %cst_17 {dimension_numbers = #tpu.dot_dimension_numbers<[1], [0], [0], [1], [0, 0, 1, 1], [], []>} : vector<16x32xf32>, vector<32x32xf32>, vector<16x32xf32> -> vector<16x32xf32>
    %38 = vector.shape_cast %33 : vector<16x32xf32> to vector<2x8x32xf32>
    %39 = vector.shape_cast %35 : vector<16x32xf32> to vector<2x8x32xf32>
    %40 = vector.shape_cast %37 : vector<16x32xf32> to vector<2x8x32xf32>
    %41 = vector.extract_strided_slice %38 {offsets = [0, 0, 0], sizes = [2, 8, 8], strides = [1, 1, 1]} : vector<2x8x32xf32> to vector<2x8x8xf32>
    %42 = vector.extract_strided_slice %39 {offsets = [0, 0, 0], sizes = [2, 8, 8], strides = [1, 1, 1]} : vector<2x8x32xf32> to vector<2x8x8xf32>
    %43 = vector.extract_strided_slice %40 {offsets = [0, 0, 0], sizes = [2, 8, 8], strides = [1, 1, 1]} : vector<2x8x32xf32> to vector<2x8x8xf32>
    "tpu.trace_start"() <{level = 10 : i32, message = "ntd,nsd->nts"}> : () -> ()
    %cst_18 = arith.constant dense<0.000000e+00> : vector<2x8x8xf32>
    %44 = tpu.matmul %41, %42, %cst_18 {dimension_numbers = #tpu.dot_dimension_numbers<[2], [2], [1], [1], [0, 0, 0, 1, 1, 1], [0], [0]>} : vector<2x8x8xf32>, vector<2x8x8xf32>, vector<2x8x8xf32> -> vector<2x8x8xf32>
    "tpu.trace_stop"() : () -> ()
    %cst_19 = arith.constant dense<0xFF800000> : vector<2x8xf32>
    %45 = vector.multi_reduction <maximumf>, %44, %cst_19 [2] : vector<2x8x8xf32> to vector<2x8xf32>
    %46 = vector.shape_cast %45 : vector<2x8xf32> to vector<2x8x1xf32>
    %47 = vector.broadcast %46 : vector<2x8x1xf32> to vector<2x8x8xf32>
    %48 = arith.subf %44, %47 : vector<2x8x8xf32>
    %49 = math.exp %48 : vector<2x8x8xf32>
    %cst_20 = arith.constant dense<0.000000e+00> : vector<2x8xf32>
    %50 = vector.multi_reduction <add>, %49, %cst_20 [2] : vector<2x8x8xf32> to vector<2x8xf32>
    %51 = vector.shape_cast %50 : vector<2x8xf32> to vector<2x8x1xf32>
    %cst_21 = arith.constant 1.000000e+00 : f32
    %52 = vector.broadcast %cst_21 : f32 to vector<2x8x1xf32>
    %53 = arith.divf %52, %51 : vector<2x8x1xf32>
    %54 = vector.broadcast %53 : vector<2x8x1xf32> to vector<2x8x8xf32>
    %55 = arith.mulf %49, %54 : vector<2x8x8xf32>
    "tpu.trace_start"() <{level = 10 : i32, message = "nts,nsd->ntd"}> : () -> ()
    %cst_22 = arith.constant dense<0.000000e+00> : vector<2x8x8xf32>
    %56 = tpu.matmul %55, %43, %cst_22 {dimension_numbers = #tpu.dot_dimension_numbers<[2], [1], [1], [2], [0, 0, 0, 1, 1, 2], [0], [0]>} : vector<2x8x8xf32>, vector<2x8x8xf32>, vector<2x8x8xf32> -> vector<2x8x8xf32>
    "tpu.trace_stop"() : () -> ()
    %57 = vector.extract_strided_slice %38 {offsets = [0, 0, 8], sizes = [2, 8, 8], strides = [1, 1, 1]} : vector<2x8x32xf32> to vector<2x8x8xf32>
    %58 = vector.extract_strided_slice %39 {offsets = [0, 0, 8], sizes = [2, 8, 8], strides = [1, 1, 1]} : vector<2x8x32xf32> to vector<2x8x8xf32>
    %59 = vector.extract_strided_slice %40 {offsets = [0, 0, 8], sizes = [2, 8, 8], strides = [1, 1, 1]} : vector<2x8x32xf32> to vector<2x8x8xf32>
    "tpu.trace_start"() <{level = 10 : i32, message = "ntd,nsd->nts"}> : () -> ()
    %cst_23 = arith.constant dense<0.000000e+00> : vector<2x8x8xf32>
    %60 = tpu.matmul %57, %58, %cst_23 {dimension_numbers = #tpu.dot_dimension_numbers<[2], [2], [1], [1], [0, 0, 0, 1, 1, 1], [0], [0]>} : vector<2x8x8xf32>, vector<2x8x8xf32>, vector<2x8x8xf32> -> vector<2x8x8xf32>
    "tpu.trace_stop"() : () -> ()
    %cst_24 = arith.constant dense<0xFF800000> : vector<2x8xf32>
    %61 = vector.multi_reduction <maximumf>, %60, %cst_24 [2] : vector<2x8x8xf32> to vector<2x8xf32>
    %62 = vector.shape_cast %61 : vector<2x8xf32> to vector<2x8x1xf32>
    %63 = vector.broadcast %62 : vector<2x8x1xf32> to vector<2x8x8xf32>
    %64 = arith.subf %60, %63 : vector<2x8x8xf32>
    %65 = math.exp %64 : vector<2x8x8xf32>
    %cst_25 = arith.constant dense<0.000000e+00> : vector<2x8xf32>
    %66 = vector.multi_reduction <add>, %65, %cst_25 [2] : vector<2x8x8xf32> to vector<2x8xf32>
    %67 = vector.shape_cast %66 : vector<2x8xf32> to vector<2x8x1xf32>
    %cst_26 = arith.constant 1.000000e+00 : f32
    %68 = vector.broadcast %cst_26 : f32 to vector<2x8x1xf32>
    %69 = arith.divf %68, %67 : vector<2x8x1xf32>
    %70 = vector.broadcast %69 : vector<2x8x1xf32> to vector<2x8x8xf32>
    %71 = arith.mulf %65, %70 : vector<2x8x8xf32>
    "tpu.trace_start"() <{level = 10 : i32, message = "nts,nsd->ntd"}> : () -> ()
    %cst_27 = arith.constant dense<0.000000e+00> : vector<2x8x8xf32>
    %72 = tpu.matmul %71, %59, %cst_27 {dimension_numbers = #tpu.dot_dimension_numbers<[2], [1], [1], [2], [0, 0, 0, 1, 1, 2], [0], [0]>} : vector<2x8x8xf32>, vector<2x8x8xf32>, vector<2x8x8xf32> -> vector<2x8x8xf32>
    "tpu.trace_stop"() : () -> ()
    %73 = vector.extract_strided_slice %38 {offsets = [0, 0, 16], sizes = [2, 8, 8], strides = [1, 1, 1]} : vector<2x8x32xf32> to vector<2x8x8xf32>
    %74 = vector.extract_strided_slice %39 {offsets = [0, 0, 16], sizes = [2, 8, 8], strides = [1, 1, 1]} : vector<2x8x32xf32> to vector<2x8x8xf32>
    %75 = vector.extract_strided_slice %40 {offsets = [0, 0, 16], sizes = [2, 8, 8], strides = [1, 1, 1]} : vector<2x8x32xf32> to vector<2x8x8xf32>
    "tpu.trace_start"() <{level = 10 : i32, message = "ntd,nsd->nts"}> : () -> ()
    %cst_28 = arith.constant dense<0.000000e+00> : vector<2x8x8xf32>
    %76 = tpu.matmul %73, %74, %cst_28 {dimension_numbers = #tpu.dot_dimension_numbers<[2], [2], [1], [1], [0, 0, 0, 1, 1, 1], [0], [0]>} : vector<2x8x8xf32>, vector<2x8x8xf32>, vector<2x8x8xf32> -> vector<2x8x8xf32>
    "tpu.trace_stop"() : () -> ()
    %cst_29 = arith.constant dense<0xFF800000> : vector<2x8xf32>
    %77 = vector.multi_reduction <maximumf>, %76, %cst_29 [2] : vector<2x8x8xf32> to vector<2x8xf32>
    %78 = vector.shape_cast %77 : vector<2x8xf32> to vector<2x8x1xf32>
    %79 = vector.broadcast %78 : vector<2x8x1xf32> to vector<2x8x8xf32>
    %80 = arith.subf %76, %79 : vector<2x8x8xf32>
    %81 = math.exp %80 : vector<2x8x8xf32>
    %cst_30 = arith.constant dense<0.000000e+00> : vector<2x8xf32>
    %82 = vector.multi_reduction <add>, %81, %cst_30 [2] : vector<2x8x8xf32> to vector<2x8xf32>
    %83 = vector.shape_cast %82 : vector<2x8xf32> to vector<2x8x1xf32>
    %cst_31 = arith.constant 1.000000e+00 : f32
    %84 = vector.broadcast %cst_31 : f32 to vector<2x8x1xf32>
    %85 = arith.divf %84, %83 : vector<2x8x1xf32>
    %86 = vector.broadcast %85 : vector<2x8x1xf32> to vector<2x8x8xf32>
    %87 = arith.mulf %81, %86 : vector<2x8x8xf32>
    "tpu.trace_start"() <{level = 10 : i32, message = "nts,nsd->ntd"}> : () -> ()
    %cst_32 = arith.constant dense<0.000000e+00> : vector<2x8x8xf32>
    %88 = tpu.matmul %87, %75, %cst_32 {dimension_numbers = #tpu.dot_dimension_numbers<[2], [1], [1], [2], [0, 0, 0, 1, 1, 2], [0], [0]>} : vector<2x8x8xf32>, vector<2x8x8xf32>, vector<2x8x8xf32> -> vector<2x8x8xf32>
    "tpu.trace_stop"() : () -> ()
    %89 = vector.extract_strided_slice %38 {offsets = [0, 0, 24], sizes = [2, 8, 8], strides = [1, 1, 1]} : vector<2x8x32xf32> to vector<2x8x8xf32>
    %90 = vector.extract_strided_slice %39 {offsets = [0, 0, 24], sizes = [2, 8, 8], strides = [1, 1, 1]} : vector<2x8x32xf32> to vector<2x8x8xf32>
    %91 = vector.extract_strided_slice %40 {offsets = [0, 0, 24], sizes = [2, 8, 8], strides = [1, 1, 1]} : vector<2x8x32xf32> to vector<2x8x8xf32>
    "tpu.trace_start"() <{level = 10 : i32, message = "ntd,nsd->nts"}> : () -> ()
    %cst_33 = arith.constant dense<0.000000e+00> : vector<2x8x8xf32>
    %92 = tpu.matmul %89, %90, %cst_33 {dimension_numbers = #tpu.dot_dimension_numbers<[2], [2], [1], [1], [0, 0, 0, 1, 1, 1], [0], [0]>} : vector<2x8x8xf32>, vector<2x8x8xf32>, vector<2x8x8xf32> -> vector<2x8x8xf32>
    "tpu.trace_stop"() : () -> ()
    %cst_34 = arith.constant dense<0xFF800000> : vector<2x8xf32>
    %93 = vector.multi_reduction <maximumf>, %92, %cst_34 [2] : vector<2x8x8xf32> to vector<2x8xf32>
    %94 = vector.shape_cast %93 : vector<2x8xf32> to vector<2x8x1xf32>
    %95 = vector.broadcast %94 : vector<2x8x1xf32> to vector<2x8x8xf32>
    %96 = arith.subf %92, %95 : vector<2x8x8xf32>
    %97 = math.exp %96 : vector<2x8x8xf32>
    %cst_35 = arith.constant dense<0.000000e+00> : vector<2x8xf32>
    %98 = vector.multi_reduction <add>, %97, %cst_35 [2] : vector<2x8x8xf32> to vector<2x8xf32>
    %99 = vector.shape_cast %98 : vector<2x8xf32> to vector<2x8x1xf32>
    %cst_36 = arith.constant 1.000000e+00 : f32
    %100 = vector.broadcast %cst_36 : f32 to vector<2x8x1xf32>
    %101 = arith.divf %100, %99 : vector<2x8x1xf32>
    %102 = vector.broadcast %101 : vector<2x8x1xf32> to vector<2x8x8xf32>
    %103 = arith.mulf %97, %102 : vector<2x8x8xf32>
    "tpu.trace_start"() <{level = 10 : i32, message = "nts,nsd->ntd"}> : () -> ()
    %cst_37 = arith.constant dense<0.000000e+00> : vector<2x8x8xf32>
    %104 = tpu.matmul %103, %91, %cst_37 {dimension_numbers = #tpu.dot_dimension_numbers<[2], [1], [1], [2], [0, 0, 0, 1, 1, 2], [0], [0]>} : vector<2x8x8xf32>, vector<2x8x8xf32>, vector<2x8x8xf32> -> vector<2x8x8xf32>
    "tpu.trace_stop"() : () -> ()
    %105 = tpu.concatenate %56, %72, %88, %104 in 2 : vector<2x8x8xf32>, vector<2x8x8xf32>, vector<2x8x8xf32>, vector<2x8x8xf32> -> vector<2x8x32xf32>
    %106 = vector.shape_cast %105 : vector<2x8x32xf32> to vector<16x32xf32>
    %107 = arith.addf %31, %106 : vector<16x32xf32>
    %c0_38 = arith.constant 0 : index
    %c0_39 = arith.constant 0 : index
    %108 = vector.load %arg7[%c0_38, %c0_39] : memref<1x32xf32, #tpu.memory_space<vmem>>, vector<1x32xf32>
    %109 = vector.shape_cast %108 : vector<1x32xf32> to vector<32xf32>
    %c0_40 = arith.constant 0 : index
    %c0_41 = arith.constant 0 : index
    %110 = vector.load %arg8[%c0_40, %c0_41] : memref<1x32xf32, #tpu.memory_space<vmem>>, vector<1x32xf32>
    %111 = vector.shape_cast %110 : vector<1x32xf32> to vector<32xf32>
    %cst_42 = arith.constant dense<0.000000e+00> : vector<16xf32>
    %112 = vector.multi_reduction <add>, %107, %cst_42 [1] : vector<16x32xf32> to vector<16xf32>
    %113 = vector.shape_cast %112 : vector<16xf32> to vector<16x1xf32>
    %cst_43 = arith.constant 3.200000e+01 : f32
    %114 = vector.broadcast %cst_43 : f32 to vector<16x1xf32>
    %115 = arith.divf %113, %114 : vector<16x1xf32>
    %116 = vector.broadcast %115 : vector<16x1xf32> to vector<16x32xf32>
    %117 = arith.subf %107, %116 : vector<16x32xf32>
    %118 = arith.mulf %117, %117 : vector<16x32xf32>
    %cst_44 = arith.constant dense<0.000000e+00> : vector<16xf32>
    %119 = vector.multi_reduction <add>, %118, %cst_44 [1] : vector<16x32xf32> to vector<16xf32>
    %120 = vector.shape_cast %119 : vector<16xf32> to vector<16x1xf32>
    %cst_45 = arith.constant 3.200000e+01 : f32
    %121 = vector.broadcast %cst_45 : f32 to vector<16x1xf32>
    %122 = arith.divf %120, %121 : vector<16x1xf32>
    %123 = vector.broadcast %115 : vector<16x1xf32> to vector<16x32xf32>
    %124 = arith.subf %107, %123 : vector<16x32xf32>
    %cst_46 = arith.constant 9.99999974E-6 : f32
    %125 = vector.broadcast %cst_46 : f32 to vector<16x1xf32>
    %126 = arith.addf %122, %125 : vector<16x1xf32>
    %127 = math.rsqrt %126 : vector<16x1xf32>
    %128 = vector.broadcast %127 : vector<16x1xf32> to vector<16x32xf32>
    %129 = arith.mulf %124, %128 : vector<16x32xf32>
    %130 = vector.shape_cast %109 : vector<32xf32> to vector<1x32xf32>
    %131 = vector.broadcast %130 : vector<1x32xf32> to vector<16x32xf32>
    %132 = arith.mulf %129, %131 : vector<16x32xf32>
    %133 = vector.shape_cast %111 : vector<32xf32> to vector<1x32xf32>
    %134 = vector.broadcast %133 : vector<1x32xf32> to vector<16x32xf32>
    %135 = arith.addf %132, %134 : vector<16x32xf32>
    %c0_47 = arith.constant 0 : index
    %c0_48 = arith.constant 0 : index
    %136 = vector.load %arg9[%c0_47, %c0_48] : memref<32x32xf32, #tpu.memory_space<vmem>>, vector<32x32xf32>
    %cst_49 = arith.constant dense<0.000000e+00> : vector<16x32xf32>
    %137 = tpu.matmul %135, %136, %cst_49 {dimension_numbers = #tpu.dot_dimension_numbers<[1], [0], [0], [1], [0, 0, 1, 1], [], []>} : vector<16x32xf32>, vector<32x32xf32>, vector<16x32xf32> -> vector<16x32xf32>
    %c0_50 = arith.constant 0 : index
    %c0_51 = arith.constant 0 : index
    %138 = vector.load %arg10[%c0_50, %c0_51] : memref<1x32xf32, #tpu.memory_space<vmem>>, vector<1x32xf32>
    %139 = vector.shape_cast %138 : vector<1x32xf32> to vector<32xf32>
    %140 = vector.shape_cast %139 : vector<32xf32> to vector<1x32xf32>
    %141 = vector.broadcast %140 : vector<1x32xf32> to vector<16x32xf32>
    %142 = arith.addf %137, %141 : vector<16x32xf32>
    %cst_52 = arith.constant 0.000000e+00 : f32
    %143 = vector.broadcast %cst_52 : f32 to vector<16x32xf32>
    %144 = arith.maximumf %142, %143 : vector<16x32xf32>
    %c0_53 = arith.constant 0 : index
    %c0_54 = arith.constant 0 : index
    %145 = vector.load %arg11[%c0_53, %c0_54] : memref<32x32xf32, #tpu.memory_space<vmem>>, vector<32x32xf32>
    %cst_55 = arith.constant dense<0.000000e+00> : vector<16x32xf32>
    %146 = tpu.matmul %144, %145, %cst_55 {dimension_numbers = #tpu.dot_dimension_numbers<[1], [0], [0], [1], [0, 0, 1, 1], [], []>} : vector<16x32xf32>, vector<32x32xf32>, vector<16x32xf32> -> vector<16x32xf32>
    %c0_56 = arith.constant 0 : index
    %c0_57 = arith.constant 0 : index
    %147 = vector.load %arg12[%c0_56, %c0_57] : memref<1x32xf32, #tpu.memory_space<vmem>>, vector<1x32xf32>
    %148 = vector.shape_cast %147 : vector<1x32xf32> to vector<32xf32>
    %149 = vector.shape_cast %148 : vector<32xf32> to vector<1x32xf32>
    %150 = vector.broadcast %149 : vector<1x32xf32> to vector<16x32xf32>
    %151 = arith.addf %146, %150 : vector<16x32xf32>
    %152 = arith.addf %135, %151 : vector<16x32xf32>
    %153 = vector.extract_strided_slice %152 {offsets = [0, 0], sizes = [8, 32], strides = [1, 1]} : vector<16x32xf32> to vector<8x32xf32>
    %c0_58 = arith.constant 0 : index
    %c0_59 = arith.constant 0 : index
    %154 = vector.load %arg13[%c0_58, %c0_59] : memref<8x64xf32, #tpu.memory_space<vmem>>, vector<8x32xf32>
    tpu.vector_store %arg13[%c0_58, %c0_59], %153 {strides = array<i32>} : memref<8x64xf32, #tpu.memory_space<vmem>>, vector<8x32xf32>,
    %155 = vector.extract_strided_slice %152 {offsets = [8, 0], sizes = [8, 32], strides = [1, 1]} : vector<16x32xf32> to vector<8x32xf32>
    %c0_60 = arith.constant 0 : index
    %c32 = arith.constant 32 : index
    %156 = vector.load %arg13[%c0_60, %c32] : memref<8x64xf32, #tpu.memory_space<vmem>>, vector<8x32xf32>
    tpu.vector_store %arg13[%c0_60, %c32], %155 {strides = array<i32>} : memref<8x64xf32, #tpu.memory_space<vmem>>, vector<8x32xf32>,
    return
  }
  func.func @transform_0(%arg0: i32) -> (i32, i32) {
    %c0_i32 = arith.constant 0 : i32
    %c0_i32_0 = arith.constant 0 : i32
    return %c0_i32, %arg0 : i32, i32
  }
  func.func @transform_1(%arg0: i32) -> (i32, i32) {
    %c0_i32 = arith.constant 0 : i32
    %c0_i32_0 = arith.constant 0 : i32
    %c0_i32_1 = arith.constant 0 : i32
    return %c0_i32, %c0_i32_0 : i32, i32
  }
  func.func @transform_2(%arg0: i32) -> (i32, i32) {
    %c0_i32 = arith.constant 0 : i32
    %c0_i32_0 = arith.constant 0 : i32
    %c0_i32_1 = arith.constant 0 : i32
    return %c0_i32, %c0_i32_0 : i32, i32
  }
  func.func @transform_3(%arg0: i32) -> (i32, i32) {
    %c0_i32 = arith.constant 0 : i32
    %c0_i32_0 = arith.constant 0 : i32
    %c0_i32_1 = arith.constant 0 : i32
    return %c0_i32, %c0_i32_0 : i32, i32
  }
  func.func @transform_4(%arg0: i32) -> (i32, i32) {
    %c0_i32 = arith.constant 0 : i32
    %c0_i32_0 = arith.constant 0 : i32
    %c0_i32_1 = arith.constant 0 : i32
    return %c0_i32, %c0_i32_0 : i32, i32
  }
  func.func @transform_5(%arg0: i32) -> (i32, i32) {
    %c0_i32 = arith.constant 0 : i32
    %c0_i32_0 = arith.constant 0 : i32
    %c0_i32_1 = arith.constant 0 : i32
    return %c0_i32, %c0_i32_0 : i32, i32
  }
  func.func @transform_6(%arg0: i32) -> (i32, i32) {
    %c0_i32 = arith.constant 0 : i32
    %c0_i32_0 = arith.constant 0 : i32
    %c0_i32_1 = arith.constant 0 : i32
    return %c0_i32, %c0_i32_0 : i32, i32
  }
  func.func @transform_7(%arg0: i32) -> (i32, i32) {
    %c0_i32 = arith.constant 0 : i32
    %c0_i32_0 = arith.constant 0 : i32
    %c0_i32_1 = arith.constant 0 : i32
    return %c0_i32, %c0_i32_0 : i32, i32
  }
  func.func @transform_8(%arg0: i32) -> (i32, i32) {
    %c0_i32 = arith.constant 0 : i32
    %c0_i32_0 = arith.constant 0 : i32
    %c0_i32_1 = arith.constant 0 : i32
    return %c0_i32, %c0_i32_0 : i32, i32
  }
  func.func @transform_9(%arg0: i32) -> (i32, i32) {
    %c0_i32 = arith.constant 0 : i32
    %c0_i32_0 = arith.constant 0 : i32
    %c0_i32_1 = arith.constant 0 : i32
    return %c0_i32, %c0_i32_0 : i32, i32
  }
  func.func @transform_10(%arg0: i32) -> (i32, i32) {
    %c0_i32 = arith.constant 0 : i32
    %c0_i32_0 = arith.constant 0 : i32
    %c0_i32_1 = arith.constant 0 : i32
    return %c0_i32, %c0_i32_0 : i32, i32
  }
  func.func @transform_11(%arg0: i32) -> (i32, i32) {
    %c0_i32 = arith.constant 0 : i32
    %c0_i32_0 = arith.constant 0 : i32
    %c0_i32_1 = arith.constant 0 : i32
    return %c0_i32, %c0_i32_0 : i32, i32
  }
  func.func @transform_12(%arg0: i32) -> (i32, i32) {
    %c0_i32 = arith.constant 0 : i32
    %c0_i32_0 = arith.constant 0 : i32
    return %c0_i32, %arg0 : i32, i32
  }
}

</mosaic_0001>

<llo_original>
// kernel: tpu_custom_call.1
$region0: #{tpu_custom_call.1}
  #allocation0 [shape = 'u32[]', space=smem, size = 0x4, offset = 0x4, fixed_abs, tag = 'smem constant byte address 0x4 - core index']
  #allocation1 [shape = 'u32[144,128]{1,0:T(1,128)}', space=vmem, size = 0x12000, scoped, tag = 'internal scratch']
  %s0 = inlined_call_operand.hbm [shape: f32[8,64], index: 0, kind: input, shape index: {}]
  %s1 = inlined_call_operand.hbm [shape: f32[32,32], index: 1, kind: input, shape index: {}]
  %s2 = inlined_call_operand.hbm [shape: f32[32,32], index: 2, kind: input, shape index: {}]
  %s3 = inlined_call_operand.hbm [shape: f32[32,32], index: 3, kind: input, shape index: {}]
  %s4 = inlined_call_operand.vmem [shape: f32[1,32], index: 4, kind: input, shape index: {}]
  %s5 = inlined_call_operand.vmem [shape: f32[1,32], index: 5, kind: input, shape index: {}]
  %s6 = inlined_call_operand.vmem [shape: f32[1,32], index: 6, kind: input, shape index: {}]
  %s7 = inlined_call_operand.vmem [shape: f32[1,32], index: 7, kind: input, shape index: {}]
  %s8 = inlined_call_operand.hbm [shape: f32[32,32], index: 8, kind: input, shape index: {}]
  %s9 = inlined_call_operand.vmem [shape: f32[1,32], index: 9, kind: input, shape index: {}]
  %s10 = inlined_call_operand.vmem [shape: f32[32,32], index: 10, kind: input, shape index: {}]
  %s11 = inlined_call_operand.vmem [shape: f32[1,32], index: 11, kind: input, shape index: {}]
  %s12 = inlined_call_operand.hbm [shape: f32[8,64], index: 12, kind: output, shape index: {}]
  %s13 = sld [smem:[#allocation0]]
  $region78: #{tpu_custom_call.1} parent=0
    _
  %s15 = ssub.s32 1, %s13
  %s16 = scalar_select 0, %s15, %s13
  $region1: #{tpu_custom_call.1} parent=0
    #allocation2 [shape = 'u8[4096]{0}', space=vmem, size = 0x1000, scoped, tag = 'input window, operand 0, single buffered']
    #allocation3 [shape = 's32[1]{0}', space=sflag, size = 0x4, scoped, tag = 'scoped memory for tpu_custom_call.1']
    #allocation4 [shape = 's32[1]{0}', space=sflag, size = 0x4, scoped, tag = 'scoped memory for tpu_custom_call.1']
    #allocation5 [shape = 'u8[16384]{0}', space=vmem, size = 0x4000, scoped, tag = 'input window, operand 1, single buffered']
    #allocation6 [shape = 's32[1]{0}', space=sflag, size = 0x4, scoped, tag = 'scoped memory for tpu_custom_call.1']
    #allocation7 [shape = 'u8[16384]{0}', space=vmem, size = 0x4000, scoped, tag = 'input window, operand 2, single buffered']
    #allocation8 [shape = 'u8[16384]{0}', space=vmem, size = 0x4000, scoped, tag = 'input window, operand 3, single buffered']
    #allocation9 [shape = 's32[1]{0}', space=sflag, size = 0x4, scoped, tag = 'scoped memory for tpu_custom_call.1']
    #allocation10 [shape = 'u8[16384]{0}', space=vmem, size = 0x4000, scoped, tag = 'input window, operand 8, single buffered']
    #allocation11 [shape = 'u8[4096]{0}', space=vmem, size = 0x1000, scoped, tag = 'output window, operand 0, single buffered']
    %17 = vsyncpa [#allocation3], 0
    %18 = vsyncpa [#allocation6], 0
    %19 = vsyncpa [#allocation9], 0
    %20 = vsyncpa [#allocation4], 0
    // Predicated region
    $region2: #{tpu_custom_call.1} parent=1 // pred_check
      _
    $region3: #{tpu_custom_call.1} parent=1 // pred_check_branch
      %22 = sbr.rel (0) target = $region5
    $region4: #{tpu_custom_call.1} parent=1 // pred_region
      %s24 = ssub.s32 128, 128
      %25 = vsyncadd [#allocation3], %s24
      %s27 = sshll.u32 [#allocation2], 4
      %s28 = int_to_ptr.vmem [resolvable:$true] %s27
      %30 = dma.hbm_to_vmem [thread:$0]  %s0, 128, %s28, [#allocation3]
    $region5: #{tpu_custom_call.1} parent=1 // pred_fallthru
      _
    // Predicated region
    $region6: #{tpu_custom_call.1} parent=1 // pred_check
      _
    $region7: #{tpu_custom_call.1} parent=1 // pred_check_branch
      %32 = sbr.rel (0) target = $region9
    $region8: #{tpu_custom_call.1} parent=1 // pred_region
      %s34 = ssub.s32 512, 512
      %35 = vsyncadd [#allocation6], %s34
      %s36 = sshll.u32 [#allocation5], 4
      %s37 = int_to_ptr.vmem [resolvable:$true] %s36
      %42 = dma.hbm_to_vmem [thread:$0]  %s1, 512, %s37, [#allocation6], 128, 128, 8
    $region9: #{tpu_custom_call.1} parent=1 // pred_fallthru
      _
    // Predicated region
    $region10: #{tpu_custom_call.1} parent=1 // pred_check
      _
    $region11: #{tpu_custom_call.1} parent=1 // pred_check_branch
      %44 = sbr.rel (0) target = $region13
    $region12: #{tpu_custom_call.1} parent=1 // pred_region
      %s46 = ssub.s32 512, 512
      %47 = vsyncadd [#allocation6], %s46
      %s48 = sshll.u32 [#allocation7], 4
      %s49 = int_to_ptr.vmem [resolvable:$true] %s48
      %54 = dma.hbm_to_vmem [thread:$0]  %s2, 512, %s49, [#allocation6], 128, 128, 8
    $region13: #{tpu_custom_call.1} parent=1 // pred_fallthru
      _
    // Predicated region
    $region14: #{tpu_custom_call.1} parent=1 // pred_check
      _
    $region15: #{tpu_custom_call.1} parent=1 // pred_check_branch
      %56 = sbr.rel (0) target = $region17
    $region16: #{tpu_custom_call.1} parent=1 // pred_region
      %s58 = ssub.s32 512, 512
      %59 = vsyncadd [#allocation9], %s58
      %s60 = sshll.u32 [#allocation8], 4
      %s61 = int_to_ptr.vmem [resolvable:$true] %s60
      %66 = dma.hbm_to_vmem [thread:$0]  %s3, 512, %s61, [#allocation9], 128, 128, 8
    $region17: #{tpu_custom_call.1} parent=1 // pred_fallthru
      _
    // Predicated region
    $region18: #{tpu_custom_call.1} parent=1 // pred_check
      _
    $region19: #{tpu_custom_call.1} parent=1 // pred_check_branch
      %68 = sbr.rel (0) target = $region21
    $region20: #{tpu_custom_call.1} parent=1 // pred_region
      _
    $region21: #{tpu_custom_call.1} parent=1 // pred_fallthru
      _
    // Predicated region
    $region22: #{tpu_custom_call.1} parent=1 // pred_check
      _
    $region23: #{tpu_custom_call.1} parent=1 // pred_check_branch
      %70 = sbr.rel (0) target = $region25
    $region24: #{tpu_custom_call.1} parent=1 // pred_region
      _
    $region25: #{tpu_custom_call.1} parent=1 // pred_fallthru
      _
    // Predicated region
    $region26: #{tpu_custom_call.1} parent=1 // pred_check
      _
    $region27: #{tpu_custom_call.1} parent=1 // pred_check_branch
      %72 = sbr.rel (0) target = $region29
    $region28: #{tpu_custom_call.1} parent=1 // pred_region
      _
    $region29: #{tpu_custom_call.1} parent=1 // pred_fallthru
      _
    // Predicated region
    $region30: #{tpu_custom_call.1} parent=1 // pred_check
      _
    $region31: #{tpu_custom_call.1} parent=1 // pred_check_branch
      %74 = sbr.rel (0) target = $region33
    $region32: #{tpu_custom_call.1} parent=1 // pred_region
      _
    $region33: #{tpu_custom_call.1} parent=1 // pred_fallthru
      _
    // Predicated region
    $region34: #{tpu_custom_call.1} parent=1 // pred_check
      _
    $region35: #{tpu_custom_call.1} parent=1 // pred_check_branch
      %76 = sbr.rel (0) target = $region37
    $region36: #{tpu_custom_call.1} parent=1 // pred_region
      %s78 = ssub.s32 512, 512
      %79 = vsyncadd [#allocation9], %s78
      %s80 = sshll.u32 [#allocation10], 4
      %s81 = int_to_ptr.vmem [resolvable:$true] %s80
      %86 = dma.hbm_to_vmem [thread:$0]  %s8, 512, %s81, [#allocation9], 128, 128, 8
    $region37: #{tpu_custom_call.1} parent=1 // pred_fallthru
      _
    // Predicated region
    $region38: #{tpu_custom_call.1} parent=1 // pred_check
      _
    $region39: #{tpu_custom_call.1} parent=1 // pred_check_branch
      %88 = sbr.rel (0) target = $region41
    $region40: #{tpu_custom_call.1} parent=1 // pred_region
      _
    $region41: #{tpu_custom_call.1} parent=1 // pred_fallthru
      _
    // Predicated region
    $region42: #{tpu_custom_call.1} parent=1 // pred_check
      _
    $region43: #{tpu_custom_call.1} parent=1 // pred_check_branch
      %90 = sbr.rel (0) target = $region45
    $region44: #{tpu_custom_call.1} parent=1 // pred_region
      _
    $region45: #{tpu_custom_call.1} parent=1 // pred_fallthru
      _
    // Predicated region
    $region46: #{tpu_custom_call.1} parent=1 // pred_check
      _
    $region47: #{tpu_custom_call.1} parent=1 // pred_check_branch
      %92 = sbr.rel (0) target = $region49
    $region48: #{tpu_custom_call.1} parent=1 // pred_region
      _
    $region49: #{tpu_custom_call.1} parent=1 // pred_fallthru
      _
    // Predicated region
    $region50: #{tpu_custom_call.1} parent=1 // pred_check
      _
    $region51: #{tpu_custom_call.1} parent=1 // pred_check_branch
      %94 = sbr.rel (0) target = $region53
    $region52: #{tpu_custom_call.1} parent=1 // pred_region
      %95 = dma.done [#allocation3], 128
    $region53: #{tpu_custom_call.1} parent=1 // pred_fallthru
      _
    // Predicated region
    $region54: #{tpu_custom_call.1} parent=1 // pred_check
      _
    $region55: #{tpu_custom_call.1} parent=1 // pred_check_branch
      %97 = sbr.rel (0) target = $region57
    $region56: #{tpu_custom_call.1} parent=1 // pred_region
      %98 = dma.done [#allocation6], 512
    $region57: #{tpu_custom_call.1} parent=1 // pred_fallthru
      _
    // Predicated region
    $region58: #{tpu_custom_call.1} parent=1 // pred_check
      _
    $region59: #{tpu_custom_call.1} parent=1 // pred_check_branch
      %100 = sbr.rel (0) target = $region61
    $region60: #{tpu_custom_call.1} parent=1 // pred_region
      %101 = dma.done [#allocation6], 512
    $region61: #{tpu_custom_call.1} parent=1 // pred_fallthru
      _
    // Predicated region
    $region62: #{tpu_custom_call.1} parent=1 // pred_check
      _
    $region63: #{tpu_custom_call.1} parent=1 // pred_check_branch
      %103 = sbr.rel (0) target = $region65
    $region64: #{tpu_custom_call.1} parent=1 // pred_region
      %104 = dma.done [#allocation9], 512
    $region65: #{tpu_custom_call.1} parent=1 // pred_fallthru
      _
    // Predicated region
    $region66: #{tpu_custom_call.1} parent=1 // pred_check
      _
    $region67: #{tpu_custom_call.1} parent=1 // pred_check_branch
      %106 = sbr.rel (0) target = $region69
    $region68: #{tpu_custom_call.1} parent=1 // pred_region
      %107 = dma.done [#allocation9], 512
    $region69: #{tpu_custom_call.1} parent=1 // pred_fallthru
      _
    %v108 = vld [vmem:[#allocation2] sm:$0xff]
    %110 = vrot.lane.b32.xlu0 %v108, 96
    %v111 = vpop.permute.xlu0 %110
    %v113 = vld [vmem:[%s4] sm:$0x1]
    %v114 = vld [vmem:[%s5] sm:$0x1]
    %vm115 = vcmask 261120
    %v116 = vsel %vm115, %v108, 0.0
    %117 = vadd.xlane.f32.xlu0 %v116
    %v118 = vpop.xlane.xlu0 %117
    %v119 = vsel %vm115, %v111, 0.0
    %120 = vadd.xlane.f32.xlu0 %v119
    %v121 = vpop.xlane.xlu0 %120
    %v122 = vrcp.pop 32.0
    %v123 = vmul.f32 %v118, %v122
    %v124 = vmul.f32 %v121, %v122
    %v125 = vsub.f32 %v108, %v123
    %v126 = vsub.f32 %v111, %v124
    %v127 = vmul.f32 %v125, %v125
    %v128 = vmul.f32 %v126, %v126
    %v129 = vsel %vm115, %v127, 0.0
    %130 = vadd.xlane.f32.xlu0 %v129
    %v131 = vpop.xlane.xlu0 %130
    %v132 = vsel %vm115, %v128, 0.0
    %133 = vadd.xlane.f32.xlu0 %v132
    %v134 = vpop.xlane.xlu0 %133
    %v135 = vmul.f32 %v131, %v122
    %v136 = vmul.f32 %v134, %v122
    %v137 = vadd.f32 %v135, 1e-05
    %v138 = vadd.f32 %v136, 1e-05
    %v139 = vrsqrt.pop %v137
    %v140 = vrsqrt.pop %v138
    %v141 = vmul.f32 %v125, %v139
    %v142 = vmul.f32 %v126, %v140
    %v144 = vlaneseq
    %v145 = vshrl.u32 %v144, 7
    %v146 = vsub.s32 0, %v145
    %v147 = vrot.slane %v113, %v146
    %v149 = vmul.f32 %v141, %v147
    %v150 = vmul.f32 %v142, %v147
    %v152 = vlaneseq
    %v153 = vshrl.u32 %v152, 7
    %v154 = vsub.s32 0, %v153
    %v155 = vrot.slane %v114, %v154
    %v157 = vadd.f32 %v149, %v155
    %v158 = vadd.f32 %v150, %v155
    %v159 = vld [vmem:[#allocation5] sm:$0xff]
    %v160 = vld [vmem:[#allocation5 + $0x8] sm:$0xff]
    %v161 = vld [vmem:[#allocation5 + $0x10] sm:$0xff]
    %v162 = vld [vmem:[#allocation5 + $0x18] sm:$0xff]
    %v164 = vsel %vm115, %v157, 0
    %v167 = vsel %vm115, %v158, 0
    %169 = vmatprep.subr.mxu0 0.0
    %170 = vmatpush1.msra.mxu0 %v159
    %171 = vmatprep.subr.mxu0 0.0
    %172 = vmatpush1.msra.mxu0 %v160
    %173 = vmatprep.subr.mxu0 0.0
    %174 = vmatpush1.msra.mxu0 %v161
    %175 = vmatprep.subr.mxu0 0.0
    %176 = vmatpush1.msra.mxu0 %v162
    %177 = vmatprep.subr.mxu0 0.0
    %178 = vmatpush1.msra.mxu0 0.0
    %179 = vmatprep.subr.mxu0 0.0
    %180 = vmatpush1.msra.mxu0 0.0
    %181 = vmatprep.subr.mxu0 0.0
    %182 = vmatpush1.msra.mxu0 0.0
    %183 = vmatprep.subr.mxu0 0.0
    %184 = vmatpush1.msra.mxu0 0.0
    %185 = vmatprep.subr.mxu0 0.0
    %186 = vmatpush1.msra.mxu0 0.0
    %187 = vmatprep.subr.mxu0 0.0
    %188 = vmatpush1.msra.mxu0 0.0
    %189 = vmatprep.subr.mxu0 0.0
    %190 = vmatpush1.msra.mxu0 0.0
    %191 = vmatprep.subr.mxu0 0.0
    %192 = vmatpush1.msra.mxu0 0.0
    %193 = vmatprep.subr.mxu0 0.0
    %194 = vmatpush1.msra.mxu0 0.0
    %195 = vmatprep.subr.mxu0 0.0
    %196 = vmatpush1.msra.mxu0 0.0
    %197 = vmatprep.subr.mxu0 0.0
    %198 = vmatpush1.msra.mxu0 0.0
    %199 = vmatprep.subr.mxu0 0.0
    %200 = vmatpush1.msra.mxu0 0.0
    %201 = vmatprep.subr.mxu0 0.0
    %202 = vmatpush1.msra.mxu0 0.0
    %203 = vmatprep.subr.mxu0 0.0
    %204 = vmatpush1.msra.mxu0 0.0
    %205 = vmatprep.subr.mxu0 0.0
    %206 = vmatpush1.msra.mxu0 0.0
    %207 = vmatprep.subr.mxu0 0.0
    %208 = vmatpush1.msra.mxu0 0.0
    %209 = vmatprep.subr.mxu0 0.0
    %210 = vmatpush1.msra.mxu0 0.0
    %211 = vmatprep.subr.mxu0 0.0
    %212 = vmatpush1.msra.mxu0 0.0
    %213 = vmatprep.subr.mxu0 0.0
    %214 = vmatpush1.msra.mxu0 0.0
    %215 = vmatprep.subr.mxu0 0.0
    %216 = vmatpush1.msra.mxu0 0.0
    %217 = vmatprep.subr.mxu0 0.0
    %218 = vmatpush1.msra.mxu0 0.0
    %219 = vmatprep.subr.mxu0 0.0
    %220 = vmatpush1.msra.mxu0 0.0
    %221 = vmatprep.subr.mxu0 0.0
    %222 = vmatpush1.msra.mxu0 0.0
    %223 = vmatprep.subr.mxu0 0.0
    %224 = vmatpush1.msra.mxu0 0.0
    %225 = vmatprep.subr.mxu0 0.0
    %226 = vmatpush1.msra.mxu0 0.0
    %227 = vmatprep.subr.mxu0 0.0
    %228 = vmatpush1.msra.mxu0 0.0
    %229 = vmatprep.subr.mxu0 0.0
    %230 = vmatpush1.msra.mxu0 0.0
    %231 = vmatprep.subr.mxu0 0.0
    %232 = vmatpush1.msra.mxu0 0.0
    %233 = vmatprep.mubr.f32.mxu0 0.0
    %234 = vmatmul.mubr.f32.gmra.mrb[0].mxu0 %v164
    %v235 = vpop.f32.mrb[0].mxu0
    %v236 = vadd.f32 0.0, %v235
    %v237 = vpop.f32.mrb[0].mxu0
    %238 = vmatprep.mubr.f32.mxu0 0.0
    %239 = vmatmul.mubr.f32.gmra.mrb[0].mxu0 %v167
    %v240 = vpop.f32.mrb[0].mxu0
    %v241 = vadd.f32 0.0, %v240
    %v242 = vpop.f32.mrb[0].mxu0
    %243 = vdwg.mxu0
    %v244 = vld [vmem:[#allocation7] sm:$0xff]
    %v245 = vld [vmem:[#allocation7 + $0x8] sm:$0xff]
    %v246 = vld [vmem:[#allocation7 + $0x10] sm:$0xff]
    %v247 = vld [vmem:[#allocation7 + $0x18] sm:$0xff]
    %248 = vmatprep.subr.mxu0 0.0
    %249 = vmatpush1.msra.mxu0 %v244
    %250 = vmatprep.subr.mxu0 0.0
    %251 = vmatpush1.msra.mxu0 %v245
    %252 = vmatprep.subr.mxu0 0.0
    %253 = vmatpush1.msra.mxu0 %v246
    %254 = vmatprep.subr.mxu0 0.0
    %255 = vmatpush1.msra.mxu0 %v247
    %256 = vmatprep.subr.mxu0 0.0
    %257 = vmatpush1.msra.mxu0 0.0
    %258 = vmatprep.subr.mxu0 0.0
    %259 = vmatpush1.msra.mxu0 0.0
    %260 = vmatprep.subr.mxu0 0.0
    %261 = vmatpush1.msra.mxu0 0.0
    %262 = vmatprep.subr.mxu0 0.0
    %263 = vmatpush1.msra.mxu0 0.0
    %264 = vmatprep.subr.mxu0 0.0
    %265 = vmatpush1.msra.mxu0 0.0
    %266 = vmatprep.subr.mxu0 0.0
    %267 = vmatpush1.msra.mxu0 0.0
    %268 = vmatprep.subr.mxu0 0.0
    %269 = vmatpush1.msra.mxu0 0.0
    %270 = vmatprep.subr.mxu0 0.0
    %271 = vmatpush1.msra.mxu0 0.0
    %272 = vmatprep.subr.mxu0 0.0
    %273 = vmatpush1.msra.mxu0 0.0
    %274 = vmatprep.subr.mxu0 0.0
    %275 = vmatpush1.msra.mxu0 0.0
    %276 = vmatprep.subr.mxu0 0.0
    %277 = vmatpush1.msra.mxu0 0.0
    %278 = vmatprep.subr.mxu0 0.0
    %279 = vmatpush1.msra.mxu0 0.0
    %280 = vmatprep.subr.mxu0 0.0
    %281 = vmatpush1.msra.mxu0 0.0
    %282 = vmatprep.subr.mxu0 0.0
    %283 = vmatpush1.msra.mxu0 0.0
    %284 = vmatprep.subr.mxu0 0.0
    %285 = vmatpush1.msra.mxu0 0.0
    %286 = vmatprep.subr.mxu0 0.0
    %287 = vmatpush1.msra.mxu0 0.0
    %288 = vmatprep.subr.mxu0 0.0
    %289 = vmatpush1.msra.mxu0 0.0
    %290 = vmatprep.subr.mxu0 0.0
    %291 = vmatpush1.msra.mxu0 0.0
    %292 = vmatprep.subr.mxu0 0.0
    %293 = vmatpush1.msra.mxu0 0.0
    %294 = vmatprep.subr.mxu0 0.0
    %295 = vmatpush1.msra.mxu0 0.0
    %296 = vmatprep.subr.mxu0 0.0
    %297 = vmatpush1.msra.mxu0 0.0
    %298 = vmatprep.subr.mxu0 0.0
    %299 = vmatpush1.msra.mxu0 0.0
    %300 = vmatprep.subr.mxu0 0.0
    %301 = vmatpush1.msra.mxu0 0.0
    %302 = vmatprep.subr.mxu0 0.0
    %303 = vmatpush1.msra.mxu0 0.0
    %304 = vmatprep.subr.mxu0 0.0
    %305 = vmatpush1.msra.mxu0 0.0
    %306 = vmatprep.subr.mxu0 0.0
    %307 = vmatpush1.msra.mxu0 0.0
    %308 = vmatprep.subr.mxu0 0.0
    %309 = vmatpush1.msra.mxu0 0.0
    %310 = vmatprep.subr.mxu0 0.0
    %311 = vmatpush1.msra.mxu0 0.0
    %312 = vmatprep.mubr.f32.mxu0 0.0
    %313 = vmatmul.mubr.f32.gmra.mrb[0].mxu0 %v164
    %v314 = vpop.f32.mrb[0].mxu0
    %v315 = vadd.f32 0.0, %v314
    %v316 = vpop.f32.mrb[0].mxu0
    %317 = vmatprep.mubr.f32.mxu0 0.0
    %318 = vmatmul.mubr.f32.gmra.mrb[0].mxu0 %v167
    %v319 = vpop.f32.mrb[0].mxu0
    %v320 = vadd.f32 0.0, %v319
    %v321 = vpop.f32.mrb[0].mxu0
    %322 = vdwg.mxu0
    %v323 = vld [vmem:[#allocation8] sm:$0xff]
    %v324 = vld [vmem:[#allocation8 + $0x8] sm:$0xff]
    %v325 = vld [vmem:[#allocation8 + $0x10] sm:$0xff]
    %v326 = vld [vmem:[#allocation8 + $0x18] sm:$0xff]
    %327 = vmatprep.subr.mxu0 0.0
    %328 = vmatpush1.msra.mxu0 %v323
    %329 = vmatprep.subr.mxu0 0.0
    %330 = vmatpush1.msra.mxu0 %v324
    %331 = vmatprep.subr.mxu0 0.0
    %332 = vmatpush1.msra.mxu0 %v325
    %333 = vmatprep.subr.mxu0 0.0
    %334 = vmatpush1.msra.mxu0 %v326
    %335 = vmatprep.subr.mxu0 0.0
    %336 = vmatpush1.msra.mxu0 0.0
    %337 = vmatprep.subr.mxu0 0.0
    %338 = vmatpush1.msra.mxu0 0.0
    %339 = vmatprep.subr.mxu0 0.0
    %340 = vmatpush1.msra.mxu0 0.0
    %341 = vmatprep.subr.mxu0 0.0
    %342 = vmatpush1.msra.mxu0 0.0
    %343 = vmatprep.subr.mxu0 0.0
    %344 = vmatpush1.msra.mxu0 0.0
    %345 = vmatprep.subr.mxu0 0.0
    %346 = vmatpush1.msra.mxu0 0.0
    %347 = vmatprep.subr.mxu0 0.0
    %348 = vmatpush1.msra.mxu0 0.0
    %349 = vmatprep.subr.mxu0 0.0
    %350 = vmatpush1.msra.mxu0 0.0
    %351 = vmatprep.subr.mxu0 0.0
    %352 = vmatpush1.msra.mxu0 0.0
    %353 = vmatprep.subr.mxu0 0.0
    %354 = vmatpush1.msra.mxu0 0.0
    %355 = vmatprep.subr.mxu0 0.0
    %356 = vmatpush1.msra.mxu0 0.0
    %357 = vmatprep.subr.mxu0 0.0
    %358 = vmatpush1.msra.mxu0 0.0
    %359 = vmatprep.subr.mxu0 0.0
    %360 = vmatpush1.msra.mxu0 0.0
    %361 = vmatprep.subr.mxu0 0.0
    %362 = vmatpush1.msra.mxu0 0.0
    %363 = vmatprep.subr.mxu0 0.0
    %364 = vmatpush1.msra.mxu0 0.0
    %365 = vmatprep.subr.mxu0 0.0
    %366 = vmatpush1.msra.mxu0 0.0
    %367 = vmatprep.subr.mxu0 0.0
    %368 = vmatpush1.msra.mxu0 0.0
    %369 = vmatprep.subr.mxu0 0.0
    %370 = vmatpush1.msra.mxu0 0.0
    %371 = vmatprep.subr.mxu0 0.0
    %372 = vmatpush1.msra.mxu0 0.0
    %373 = vmatprep.subr.mxu0 0.0
    %374 = vmatpush1.msra.mxu0 0.0
    %375 = vmatprep.subr.mxu0 0.0
    %376 = vmatpush1.msra.mxu0 0.0
    %377 = vmatprep.subr.mxu0 0.0
    %378 = vmatpush1.msra.mxu0 0.0
    %379 = vmatprep.subr.mxu0 0.0
    %380 = vmatpush1.msra.mxu0 0.0
    %381 = vmatprep.subr.mxu0 0.0
    %382 = vmatpush1.msra.mxu0 0.0
    %383 = vmatprep.subr.mxu0 0.0
    %384 = vmatpush1.msra.mxu0 0.0
    %385 = vmatprep.subr.mxu0 0.0
    %386 = vmatpush1.msra.mxu0 0.0
    %387 = vmatprep.subr.mxu0 0.0
    %388 = vmatpush1.msra.mxu0 0.0
    %389 = vmatprep.subr.mxu0 0.0
    %390 = vmatpush1.msra.mxu0 0.0
    %391 = vmatprep.mubr.f32.mxu0 0.0
    %392 = vmatmul.mubr.f32.gmra.mrb[0].mxu0 %v164
    %v393 = vpop.f32.mrb[0].mxu0
    %v394 = vadd.f32 0.0, %v393
    %v395 = vpop.f32.mrb[0].mxu0
    %396 = vmatprep.mubr.f32.mxu0 0.0
    %397 = vmatmul.mubr.f32.gmra.mrb[0].mxu0 %v167
    %v398 = vpop.f32.mrb[0].mxu0
    %v399 = vadd.f32 0.0, %v398
    %v400 = vpop.f32.mrb[0].mxu0
    %401 = vdwg.mxu0
    %vm402 = vcmask 64512
    %v404 = vsel %vm402, %v236, 0
    %v407 = vsel %vm402, %v315, 0
    %409 = vmatprep.subr.mxu0 0.0
    %410 = vmatpush1.xpose.msra.mxu0 %v407
    %411 = vmatprep.subr.mxu0 0.0
    %412 = vmatpush1.xpose.msra.mxu0 0.0
    %413 = vmatprep.subr.mxu0 0.0
    %414 = vmatpush1.xpose.msra.mxu0 0.0
    %415 = vmatprep.subr.mxu0 0.0
    %416 = vmatpush1.xpose.msra.mxu0 0.0
    %417 = vmatprep.subr.mxu0 0.0
    %418 = vmatpush1.xpose.msra.mxu0 0.0
    %419 = vmatprep.subr.mxu0 0.0
    %420 = vmatpush1.xpose.msra.mxu0 0.0
    %421 = vmatprep.subr.mxu0 0.0
    %422 = vmatpush1.xpose.msra.mxu0 0.0
    %423 = vmatprep.subr.mxu0 0.0
    %424 = vmatpush1.xpose.msra.mxu0 0.0
    %425 = vmatprep.subr.mxu0 0.0
    %426 = vmatpush1.xpose.msra.mxu0 0.0
    %427 = vmatprep.subr.mxu0 0.0
    %428 = vmatpush1.xpose.msra.mxu0 0.0
    %429 = vmatprep.subr.mxu0 0.0
    %430 = vmatpush1.xpose.msra.mxu0 0.0
    %431 = vmatprep.subr.mxu0 0.0
    %432 = vmatpush1.xpose.msra.mxu0 0.0
    %433 = vmatprep.subr.mxu0 0.0
    %434 = vmatpush1.xpose.msra.mxu0 0.0
    %435 = vmatprep.subr.mxu0 0.0
    %436 = vmatpush1.xpose.msra.mxu0 0.0
    %437 = vmatprep.subr.mxu0 0.0
    %438 = vmatpush1.xpose.msra.mxu0 0.0
    %439 = vmatprep.subr.mxu0 0.0
    %440 = vmatpush1.xpose.msra.mxu0 0.0
    %441 = vmatprep.subr.mxu0 0.0
    %442 = vmatpush1.xpose.msra.mxu0 0.0
    %443 = vmatprep.subr.mxu0 0.0
    %444 = vmatpush1.xpose.msra.mxu0 0.0
    %445 = vmatprep.subr.mxu0 0.0
    %446 = vmatpush1.xpose.msra.mxu0 0.0
    %447 = vmatprep.subr.mxu0 0.0
    %448 = vmatpush1.xpose.msra.mxu0 0.0
    %449 = vmatprep.subr.mxu0 0.0
    %450 = vmatpush1.xpose.msra.mxu0 0.0
    %451 = vmatprep.subr.mxu0 0.0
    %452 = vmatpush1.xpose.msra.mxu0 0.0
    %453 = vmatprep.subr.mxu0 0.0
    %454 = vmatpush1.xpose.msra.mxu0 0.0
    %455 = vmatprep.subr.mxu0 0.0
    %456 = vmatpush1.xpose.msra.mxu0 0.0
    %457 = vmatprep.subr.mxu0 0.0
    %458 = vmatpush1.xpose.msra.mxu0 0.0
    %459 = vmatprep.subr.mxu0 0.0
    %460 = vmatpush1.xpose.msra.mxu0 0.0
    %461 = vmatprep.subr.mxu0 0.0
    %462 = vmatpush1.xpose.msra.mxu0 0.0
    %463 = vmatprep.subr.mxu0 0.0
    %464 = vmatpush1.xpose.msra.mxu0 0.0
    %465 = vmatprep.subr.mxu0 0.0
    %466 = vmatpush1.xpose.msra.mxu0 0.0
    %467 = vmatprep.subr.mxu0 0.0
    %468 = vmatpush1.xpose.msra.mxu0 0.0
    %469 = vmatprep.subr.mxu0 0.0
    %470 = vmatpush1.xpose.msra.mxu0 0.0
    %471 = vmatprep.subr.mxu0 0.0
    %472 = vmatpush1.xpose.msra.mxu0 0.0
    %473 = vmatprep.mubr.f32.mxu0 0.0
    %474 = vmatmul.mubr.f32.gmra.mrb[0].mxu0 %v404
    %v475 = vpop.f32.mrb[0].mxu0
    %v476 = vadd.f32 0.0, %v475
    %v477 = vpop.f32.mrb[0].mxu0
    %478 = vdwg.mxu0
    %v480 = vsel %vm402, %v241, 0
    %v483 = vsel %vm402, %v320, 0
    %485 = vmatprep.subr.mxu0 0.0
    %486 = vmatpush1.xpose.msra.mxu0 %v483
    %487 = vmatprep.subr.mxu0 0.0
    %488 = vmatpush1.xpose.msra.mxu0 0.0
    %489 = vmatprep.subr.mxu0 0.0
    %490 = vmatpush1.xpose.msra.mxu0 0.0
    %491 = vmatprep.subr.mxu0 0.0
    %492 = vmatpush1.xpose.msra.mxu0 0.0
    %493 = vmatprep.subr.mxu0 0.0
    %494 = vmatpush1.xpose.msra.mxu0 0.0
    %495 = vmatprep.subr.mxu0 0.0
    %496 = vmatpush1.xpose.msra.mxu0 0.0
    %497 = vmatprep.subr.mxu0 0.0
    %498 = vmatpush1.xpose.msra.mxu0 0.0
    %499 = vmatprep.subr.mxu0 0.0
    %500 = vmatpush1.xpose.msra.mxu0 0.0
    %501 = vmatprep.subr.mxu0 0.0
    %502 = vmatpush1.xpose.msra.mxu0 0.0
    %503 = vmatprep.subr.mxu0 0.0
    %504 = vmatpush1.xpose.msra.mxu0 0.0
    %505 = vmatprep.subr.mxu0 0.0
    %506 = vmatpush1.xpose.msra.mxu0 0.0
    %507 = vmatprep.subr.mxu0 0.0
    %508 = vmatpush1.xpose.msra.mxu0 0.0
    %509 = vmatprep.subr.mxu0 0.0
    %510 = vmatpush1.xpose.msra.mxu0 0.0
    %511 = vmatprep.subr.mxu0 0.0
    %512 = vmatpush1.xpose.msra.mxu0 0.0
    %513 = vmatprep.subr.mxu0 0.0
    %514 = vmatpush1.xpose.msra.mxu0 0.0
    %515 = vmatprep.subr.mxu0 0.0
    %516 = vmatpush1.xpose.msra.mxu0 0.0
    %517 = vmatprep.subr.mxu0 0.0
    %518 = vmatpush1.xpose.msra.mxu0 0.0
    %519 = vmatprep.subr.mxu0 0.0
    %520 = vmatpush1.xpose.msra.mxu0 0.0
    %521 = vmatprep.subr.mxu0 0.0
    %522 = vmatpush1.xpose.msra.mxu0 0.0
    %523 = vmatprep.subr.mxu0 0.0
    %524 = vmatpush1.xpose.msra.mxu0 0.0
    %525 = vmatprep.subr.mxu0 0.0
    %526 = vmatpush1.xpose.msra.mxu0 0.0
    %527 = vmatprep.subr.mxu0 0.0
    %528 = vmatpush1.xpose.msra.mxu0 0.0
    %529 = vmatprep.subr.mxu0 0.0
    %530 = vmatpush1.xpose.msra.mxu0 0.0
    %531 = vmatprep.subr.mxu0 0.0
    %532 = vmatpush1.xpose.msra.mxu0 0.0
    %533 = vmatprep.subr.mxu0 0.0
    %534 = vmatpush1.xpose.msra.mxu0 0.0
    %535 = vmatprep.subr.mxu0 0.0
    %536 = vmatpush1.xpose.msra.mxu0 0.0
    %537 = vmatprep.subr.mxu0 0.0
    %538 = vmatpush1.xpose.msra.mxu0 0.0
    %539 = vmatprep.subr.mxu0 0.0
    %540 = vmatpush1.xpose.msra.mxu0 0.0
    %541 = vmatprep.subr.mxu0 0.0
    %542 = vmatpush1.xpose.msra.mxu0 0.0
    %543 = vmatprep.subr.mxu0 0.0
    %544 = vmatpush1.xpose.msra.mxu0 0.0
    %545 = vmatprep.subr.mxu0 0.0
    %546 = vmatpush1.xpose.msra.mxu0 0.0
    %547 = vmatprep.subr.mxu0 0.0
    %548 = vmatpush1.xpose.msra.mxu0 0.0
    %549 = vmatprep.mubr.f32.mxu0 0.0
    %550 = vmatmul.mubr.f32.gmra.mrb[0].mxu0 %v480
    %v551 = vpop.f32.mrb[0].mxu0
    %v552 = vadd.f32 0.0, %v551
    %v553 = vpop.f32.mrb[0].mxu0
    %554 = vdwg.mxu0
    %v555 = vsel %vm402, %v476, -inf
    %556 = vmax.xlane.f32.xlu0 %v555
    %v557 = vpop.xlane.xlu0 %556
    %v558 = vsel %vm402, %v552, -inf
    %559 = vmax.xlane.f32.xlu0 %v558
    %v560 = vpop.xlane.xlu0 %559
    %v561 = vsub.f32 %v476, %v557
    %v562 = vsub.f32 %v552, %v560
    %v563 = vmul.f32 %v561, 1.442695
    %v564 = vpow.pop %v563
    %v565 = vmul.f32 %v562, 1.442695
    %v566 = vpow.pop %v565
    %v567 = vsel %vm402, %v564, 0.0
    %568 = vadd.xlane.f32.xlu0 %v567
    %v569 = vpop.xlane.xlu0 %568
    %v570 = vsel %vm402, %v566, 0.0
    %571 = vadd.xlane.f32.xlu0 %v570
    %v572 = vpop.xlane.xlu0 %571
    %v573 = vrcp.pop %v569
    %v574 = vmul.f32 1.0, %v573
    %v575 = vrcp.pop %v572
    %v576 = vmul.f32 1.0, %v575
    %v577 = vmul.f32 %v564, %v574
    %v578 = vmul.f32 %v566, %v576
    %v580 = vsel %vm402, %v577, 0
    %582 = vmatprep.subr.mxu0 0.0
    %583 = vmatpush1.msra.mxu0 %v394
    %584 = vmatprep.subr.mxu0 0.0
    %585 = vmatpush1.msra.mxu0 0.0
    %586 = vmatprep.subr.mxu0 0.0
    %587 = vmatpush1.msra.mxu0 0.0
    %588 = vmatprep.subr.mxu0 0.0
    %589 = vmatpush1.msra.mxu0 0.0
    %590 = vmatprep.subr.mxu0 0.0
    %591 = vmatpush1.msra.mxu0 0.0
    %592 = vmatprep.subr.mxu0 0.0
    %593 = vmatpush1.msra.mxu0 0.0
    %594 = vmatprep.subr.mxu0 0.0
    %595 = vmatpush1.msra.mxu0 0.0
    %596 = vmatprep.subr.mxu0 0.0
    %597 = vmatpush1.msra.mxu0 0.0
    %598 = vmatprep.subr.mxu0 0.0
    %599 = vmatpush1.msra.mxu0 0.0
    %600 = vmatprep.subr.mxu0 0.0
    %601 = vmatpush1.msra.mxu0 0.0
    %602 = vmatprep.subr.mxu0 0.0
    %603 = vmatpush1.msra.mxu0 0.0
    %604 = vmatprep.subr.mxu0 0.0
    %605 = vmatpush1.msra.mxu0 0.0
    %606 = vmatprep.subr.mxu0 0.0
    %607 = vmatpush1.msra.mxu0 0.0
    %608 = vmatprep.subr.mxu0 0.0
    %609 = vmatpush1.msra.mxu0 0.0
    %610 = vmatprep.subr.mxu0 0.0
    %611 = vmatpush1.msra.mxu0 0.0
    %612 = vmatprep.subr.mxu0 0.0
    %613 = vmatpush1.msra.mxu0 0.0
    %614 = vmatprep.subr.mxu0 0.0
    %615 = vmatpush1.msra.mxu0 0.0
    %616 = vmatprep.subr.mxu0 0.0
    %617 = vmatpush1.msra.mxu0 0.0
    %618 = vmatprep.subr.mxu0 0.0
    %619 = vmatpush1.msra.mxu0 0.0
    %620 = vmatprep.subr.mxu0 0.0
    %621 = vmatpush1.msra.mxu0 0.0
    %622 = vmatprep.subr.mxu0 0.0
    %623 = vmatpush1.msra.mxu0 0.0
    %624 = vmatprep.subr.mxu0 0.0
    %625 = vmatpush1.msra.mxu0 0.0
    %626 = vmatprep.subr.mxu0 0.0
    %627 = vmatpush1.msra.mxu0 0.0
    %628 = vmatprep.subr.mxu0 0.0
    %629 = vmatpush1.msra.mxu0 0.0
    %630 = vmatprep.subr.mxu0 0.0
    %631 = vmatpush1.msra.mxu0 0.0
    %632 = vmatprep.subr.mxu0 0.0
    %633 = vmatpush1.msra.mxu0 0.0
    %634 = vmatprep.subr.mxu0 0.0
    %635 = vmatpush1.msra.mxu0 0.0
    %636 = vmatprep.subr.mxu0 0.0
    %637 = vmatpush1.msra.mxu0 0.0
    %638 = vmatprep.subr.mxu0 0.0
    %639 = vmatpush1.msra.mxu0 0.0
    %640 = vmatprep.subr.mxu0 0.0
    %641 = vmatpush1.msra.mxu0 0.0
    %642 = vmatprep.subr.mxu0 0.0
    %643 = vmatpush1.msra.mxu0 0.0
    %644 = vmatprep.subr.mxu0 0.0
    %645 = vmatpush1.msra.mxu0 0.0
    %646 = vmatprep.mubr.f32.mxu0 0.0
    %647 = vmatmul.mubr.f32.gmra.mrb[0].mxu0 %v580
    %v648 = vpop.f32.mrb[0].mxu0
    %v649 = vadd.f32 0.0, %v648
    %v650 = vpop.f32.mrb[0].mxu0
    %651 = vdwg.mxu0
    %v653 = vsel %vm402, %v578, 0
    %655 = vmatprep.subr.mxu0 0.0
    %656 = vmatpush1.msra.mxu0 %v399
    %657 = vmatprep.subr.mxu0 0.0
    %658 = vmatpush1.msra.mxu0 0.0
    %659 = vmatprep.subr.mxu0 0.0
    %660 = vmatpush1.msra.mxu0 0.0
    %661 = vmatprep.subr.mxu0 0.0
    %662 = vmatpush1.msra.mxu0 0.0
    %663 = vmatprep.subr.mxu0 0.0
    %664 = vmatpush1.msra.mxu0 0.0
    %665 = vmatprep.subr.mxu0 0.0
    %666 = vmatpush1.msra.mxu0 0.0
    %667 = vmatprep.subr.mxu0 0.0
    %668 = vmatpush1.msra.mxu0 0.0
    %669 = vmatprep.subr.mxu0 0.0
    %670 = vmatpush1.msra.mxu0 0.0
    %671 = vmatprep.subr.mxu0 0.0
    %672 = vmatpush1.msra.mxu0 0.0
    %673 = vmatprep.subr.mxu0 0.0
    %674 = vmatpush1.msra.mxu0 0.0
    %675 = vmatprep.subr.mxu0 0.0
    %676 = vmatpush1.msra.mxu0 0.0
    %677 = vmatprep.subr.mxu0 0.0
    %678 = vmatpush1.msra.mxu0 0.0
    %679 = vmatprep.subr.mxu0 0.0
    %680 = vmatpush1.msra.mxu0 0.0
    %681 = vmatprep.subr.mxu0 0.0
    %682 = vmatpush1.msra.mxu0 0.0
    %683 = vmatprep.subr.mxu0 0.0
    %684 = vmatpush1.msra.mxu0 0.0
    %685 = vmatprep.subr.mxu0 0.0
    %686 = vmatpush1.msra.mxu0 0.0
    %687 = vmatprep.subr.mxu0 0.0
    %688 = vmatpush1.msra.mxu0 0.0
    %689 = vmatprep.subr.mxu0 0.0
    %690 = vmatpush1.msra.mxu0 0.0
    %691 = vmatprep.subr.mxu0 0.0
    %692 = vmatpush1.msra.mxu0 0.0
    %693 = vmatprep.subr.mxu0 0.0
    %694 = vmatpush1.msra.mxu0 0.0
    %695 = vmatprep.subr.mxu0 0.0
    %696 = vmatpush1.msra.mxu0 0.0
    %697 = vmatprep.subr.mxu0 0.0
    %698 = vmatpush1.msra.mxu0 0.0
    %699 = vmatprep.subr.mxu0 0.0
    %700 = vmatpush1.msra.mxu0 0.0
    %701 = vmatprep.subr.mxu0 0.0
    %702 = vmatpush1.msra.mxu0 0.0
    %703 = vmatprep.subr.mxu0 0.0
    %704 = vmatpush1.msra.mxu0 0.0
    %705 = vmatprep.subr.mxu0 0.0
    %706 = vmatpush1.msra.mxu0 0.0
    %707 = vmatprep.subr.mxu0 0.0
    %708 = vmatpush1.msra.mxu0 0.0
    %709 = vmatprep.subr.mxu0 0.0
    %710 = vmatpush1.msra.mxu0 0.0
    %711 = vmatprep.subr.mxu0 0.0
    %712 = vmatpush1.msra.mxu0 0.0
    %713 = vmatprep.subr.mxu0 0.0
    %714 = vmatpush1.msra.mxu0 0.0
    %715 = vmatprep.subr.mxu0 0.0
    %716 = vmatpush1.msra.mxu0 0.0
    %717 = vmatprep.subr.mxu0 0.0
    %718 = vmatpush1.msra.mxu0 0.0
    %719 = vmatprep.mubr.f32.mxu0 0.0
    %720 = vmatmul.mubr.f32.gmra.mrb[0].mxu0 %v653
    %v721 = vpop.f32.mrb[0].mxu0
    %v722 = vadd.f32 0.0, %v721
    %v723 = vpop.f32.mrb[0].mxu0
    %724 = vdwg.mxu0
    %725 = vrot.lane.b32.xlu0 %v236, 120
    %v726 = vpop.permute.xlu0 %725
    %727 = vrot.lane.b32.xlu0 %v315, 120
    %v728 = vpop.permute.xlu0 %727
    %v729 = vsel %vm402, %v726, 0
    %v731 = vsel %vm402, %v728, 0
    %733 = vmatprep.subr.mxu0 0.0
    %734 = vmatpush1.xpose.msra.mxu0 %v731
    %735 = vmatprep.subr.mxu0 0.0
    %736 = vmatpush1.xpose.msra.mxu0 0.0
    %737 = vmatprep.subr.mxu0 0.0
    %738 = vmatpush1.xpose.msra.mxu0 0.0
    %739 = vmatprep.subr.mxu0 0.0
    %740 = vmatpush1.xpose.msra.mxu0 0.0
    %741 = vmatprep.subr.mxu0 0.0
    %742 = vmatpush1.xpose.msra.mxu0 0.0
    %743 = vmatprep.subr.mxu0 0.0
    %744 = vmatpush1.xpose.msra.mxu0 0.0
    %745 = vmatprep.subr.mxu0 0.0
    %746 = vmatpush1.xpose.msra.mxu0 0.0
    %747 = vmatprep.subr.mxu0 0.0
    %748 = vmatpush1.xpose.msra.mxu0 0.0
    %749 = vmatprep.subr.mxu0 0.0
    %750 = vmatpush1.xpose.msra.mxu0 0.0
    %751 = vmatprep.subr.mxu0 0.0
    %752 = vmatpush1.xpose.msra.mxu0 0.0
    %753 = vmatprep.subr.mxu0 0.0
    %754 = vmatpush1.xpose.msra.mxu0 0.0
    %755 = vmatprep.subr.mxu0 0.0
    %756 = vmatpush1.xpose.msra.mxu0 0.0
    %757 = vmatprep.subr.mxu0 0.0
    %758 = vmatpush1.xpose.msra.mxu0 0.0
    %759 = vmatprep.subr.mxu0 0.0
    %760 = vmatpush1.xpose.msra.mxu0 0.0
    %761 = vmatprep.subr.mxu0 0.0
    %762 = vmatpush1.xpose.msra.mxu0 0.0
    %763 = vmatprep.subr.mxu0 0.0
    %764 = vmatpush1.xpose.msra.mxu0 0.0
    %765 = vmatprep.subr.mxu0 0.0
    %766 = vmatpush1.xpose.msra.mxu0 0.0
    %767 = vmatprep.subr.mxu0 0.0
    %768 = vmatpush1.xpose.msra.mxu0 0.0
    %769 = vmatprep.subr.mxu0 0.0
    %770 = vmatpush1.xpose.msra.mxu0 0.0
    %771 = vmatprep.subr.mxu0 0.0
    %772 = vmatpush1.xpose.msra.mxu0 0.0
    %773 = vmatprep.subr.mxu0 0.0
    %774 = vmatpush1.xpose.msra.mxu0 0.0
    %775 = vmatprep.subr.mxu0 0.0
    %776 = vmatpush1.xpose.msra.mxu0 0.0
    %777 = vmatprep.subr.mxu0 0.0
    %778 = vmatpush1.xpose.msra.mxu0 0.0
    %779 = vmatprep.subr.mxu0 0.0
    %780 = vmatpush1.xpose.msra.mxu0 0.0
    %781 = vmatprep.subr.mxu0 0.0
    %782 = vmatpush1.xpose.msra.mxu0 0.0
    %783 = vmatprep.subr.mxu0 0.0
    %784 = vmatpush1.xpose.msra.mxu0 0.0
    %785 = vmatprep.subr.mxu0 0.0
    %786 = vmatpush1.xpose.msra.mxu0 0.0
    %787 = vmatprep.subr.mxu0 0.0
    %788 = vmatpush1.xpose.msra.mxu0 0.0
    %789 = vmatprep.subr.mxu0 0.0
    %790 = vmatpush1.xpose.msra.mxu0 0.0
    %791 = vmatprep.subr.mxu0 0.0
    %792 = vmatpush1.xpose.msra.mxu0 0.0
    %793 = vmatprep.subr.mxu0 0.0
    %794 = vmatpush1.xpose.msra.mxu0 0.0
    %795 = vmatprep.subr.mxu0 0.0
    %796 = vmatpush1.xpose.msra.mxu0 0.0
    %797 = vmatprep.mubr.f32.mxu0 0.0
    %798 = vmatmul.mubr.f32.gmra.mrb[0].mxu0 %v729
    %v799 = vpop.f32.mrb[0].mxu0
    %v800 = vadd.f32 0.0, %v799
    %v801 = vpop.f32.mrb[0].mxu0
    %802 = vdwg.mxu0
    %803 = vrot.lane.b32.xlu0 %v241, 120
    %v804 = vpop.permute.xlu0 %803
    %805 = vrot.lane.b32.xlu0 %v320, 120
    %v806 = vpop.permute.xlu0 %805
    %v807 = vsel %vm402, %v804, 0
    %v809 = vsel %vm402, %v806, 0
    %811 = vmatprep.subr.mxu0 0.0
    %812 = vmatpush1.xpose.msra.mxu0 %v809
    %813 = vmatprep.subr.mxu0 0.0
    %814 = vmatpush1.xpose.msra.mxu0 0.0
    %815 = vmatprep.subr.mxu0 0.0
    %816 = vmatpush1.xpose.msra.mxu0 0.0
    %817 = vmatprep.subr.mxu0 0.0
    %818 = vmatpush1.xpose.msra.mxu0 0.0
    %819 = vmatprep.subr.mxu0 0.0
    %820 = vmatpush1.xpose.msra.mxu0 0.0
    %821 = vmatprep.subr.mxu0 0.0
    %822 = vmatpush1.xpose.msra.mxu0 0.0
    %823 = vmatprep.subr.mxu0 0.0
    %824 = vmatpush1.xpose.msra.mxu0 0.0
    %825 = vmatprep.subr.mxu0 0.0
    %826 = vmatpush1.xpose.msra.mxu0 0.0
    %827 = vmatprep.subr.mxu0 0.0
    %828 = vmatpush1.xpose.msra.mxu0 0.0
    %829 = vmatprep.subr.mxu0 0.0
    %830 = vmatpush1.xpose.msra.mxu0 0.0
    %831 = vmatprep.subr.mxu0 0.0
    %832 = vmatpush1.xpose.msra.mxu0 0.0
    %833 = vmatprep.subr.mxu0 0.0
    %834 = vmatpush1.xpose.msra.mxu0 0.0
    %835 = vmatprep.subr.mxu0 0.0
    %836 = vmatpush1.xpose.msra.mxu0 0.0
    %837 = vmatprep.subr.mxu0 0.0
    %838 = vmatpush1.xpose.msra.mxu0 0.0
    %839 = vmatprep.subr.mxu0 0.0
    %840 = vmatpush1.xpose.msra.mxu0 0.0
    %841 = vmatprep.subr.mxu0 0.0
    %842 = vmatpush1.xpose.msra.mxu0 0.0
    %843 = vmatprep.subr.mxu0 0.0
    %844 = vmatpush1.xpose.msra.mxu0 0.0
    %845 = vmatprep.subr.mxu0 0.0
    %846 = vmatpush1.xpose.msra.mxu0 0.0
    %847 = vmatprep.subr.mxu0 0.0
    %848 = vmatpush1.xpose.msra.mxu0 0.0
    %849 = vmatprep.subr.mxu0 0.0
    %850 = vmatpush1.xpose.msra.mxu0 0.0
    %851 = vmatprep.subr.mxu0 0.0
    %852 = vmatpush1.xpose.msra.mxu0 0.0
    %853 = vmatprep.subr.mxu0 0.0
    %854 = vmatpush1.xpose.msra.mxu0 0.0
    %855 = vmatprep.subr.mxu0 0.0
    %856 = vmatpush1.xpose.msra.mxu0 0.0
    %857 = vmatprep.subr.mxu0 0.0
    %858 = vmatpush1.xpose.msra.mxu0 0.0
    %859 = vmatprep.subr.mxu0 0.0
    %860 = vmatpush1.xpose.msra.mxu0 0.0
    %861 = vmatprep.subr.mxu0 0.0
    %862 = vmatpush1.xpose.msra.mxu0 0.0
    %863 = vmatprep.subr.mxu0 0.0
    %864 = vmatpush1.xpose.msra.mxu0 0.0
    %865 = vmatprep.subr.mxu0 0.0
    %866 = vmatpush1.xpose.msra.mxu0 0.0
    %867 = vmatprep.subr.mxu0 0.0
    %868 = vmatpush1.xpose.msra.mxu0 0.0
    %869 = vmatprep.subr.mxu0 0.0
    %870 = vmatpush1.xpose.msra.mxu0 0.0
    %871 = vmatprep.subr.mxu0 0.0
    %872 = vmatpush1.xpose.msra.mxu0 0.0
    %873 = vmatprep.subr.mxu0 0.0
    %874 = vmatpush1.xpose.msra.mxu0 0.0
    %875 = vmatprep.mubr.f32.mxu0 0.0
    %876 = vmatmul.mubr.f32.gmra.mrb[0].mxu0 %v807
    %v877 = vpop.f32.mrb[0].mxu0
    %v878 = vadd.f32 0.0, %v877
    %v879 = vpop.f32.mrb[0].mxu0
    %880 = vdwg.mxu0
    %v881 = vsel %vm402, %v800, -inf
    %882 = vmax.xlane.f32.xlu0 %v881
    %v883 = vpop.xlane.xlu0 %882
    %v884 = vsel %vm402, %v878, -inf
    %885 = vmax.xlane.f32.xlu0 %v884
    %v886 = vpop.xlane.xlu0 %885
    %v887 = vsub.f32 %v800, %v883
    %v888 = vsub.f32 %v878, %v886
    %v889 = vmul.f32 %v887, 1.442695
    %v890 = vpow.pop %v889
    %v891 = vmul.f32 %v888, 1.442695
    %v892 = vpow.pop %v891
    %v893 = vsel %vm402, %v890, 0.0
    %894 = vadd.xlane.f32.xlu0 %v893
    %v895 = vpop.xlane.xlu0 %894
    %v896 = vsel %vm402, %v892, 0.0
    %897 = vadd.xlane.f32.xlu0 %v896
    %v898 = vpop.xlane.xlu0 %897
    %v899 = vrcp.pop %v895
    %v900 = vmul.f32 1.0, %v899
    %v901 = vrcp.pop %v898
    %v902 = vmul.f32 1.0, %v901
    %v903 = vmul.f32 %v890, %v900
    %v904 = vmul.f32 %v892, %v902
    %906 = vrot.lane.b32.xlu0 %v394, 120
    %v907 = vpop.permute.xlu0 %906
    %v910 = vsel %vm402, %v903, 0
    %912 = vmatprep.subr.mxu0 0.0
    %913 = vmatpush1.msra.mxu0 %v907
    %914 = vmatprep.subr.mxu0 0.0
    %915 = vmatpush1.msra.mxu0 0.0
    %916 = vmatprep.subr.mxu0 0.0
    %917 = vmatpush1.msra.mxu0 0.0
    %918 = vmatprep.subr.mxu0 0.0
    %919 = vmatpush1.msra.mxu0 0.0
    %920 = vmatprep.subr.mxu0 0.0
    %921 = vmatpush1.msra.mxu0 0.0
    %922 = vmatprep.subr.mxu0 0.0
    %923 = vmatpush1.msra.mxu0 0.0
    %924 = vmatprep.subr.mxu0 0.0
    %925 = vmatpush1.msra.mxu0 0.0
    %926 = vmatprep.subr.mxu0 0.0
    %927 = vmatpush1.msra.mxu0 0.0
    %928 = vmatprep.subr.mxu0 0.0
    %929 = vmatpush1.msra.mxu0 0.0
    %930 = vmatprep.subr.mxu0 0.0
    %931 = vmatpush1.msra.mxu0 0.0
    %932 = vmatprep.subr.mxu0 0.0
    %933 = vmatpush1.msra.mxu0 0.0
    %934 = vmatprep.subr.mxu0 0.0
    %935 = vmatpush1.msra.mxu0 0.0
    %936 = vmatprep.subr.mxu0 0.0
    %937 = vmatpush1.msra.mxu0 0.0
    %938 = vmatprep.subr.mxu0 0.0
    %939 = vmatpush1.msra.mxu0 0.0
    %940 = vmatprep.subr.mxu0 0.0
    %941 = vmatpush1.msra.mxu0 0.0
    %942 = vmatprep.subr.mxu0 0.0
    %943 = vmatpush1.msra.mxu0 0.0
    %944 = vmatprep.subr.mxu0 0.0
    %945 = vmatpush1.msra.mxu0 0.0
    %946 = vmatprep.subr.mxu0 0.0
    %947 = vmatpush1.msra.mxu0 0.0
    %948 = vmatprep.subr.mxu0 0.0
    %949 = vmatpush1.msra.mxu0 0.0
    %950 = vmatprep.subr.mxu0 0.0
    %951 = vmatpush1.msra.mxu0 0.0
    %952 = vmatprep.subr.mxu0 0.0
    %953 = vmatpush1.msra.mxu0 0.0
    %954 = vmatprep.subr.mxu0 0.0
    %955 = vmatpush1.msra.mxu0 0.0
    %956 = vmatprep.subr.mxu0 0.0
    %957 = vmatpush1.msra.mxu0 0.0
    %958 = vmatprep.subr.mxu0 0.0
    %959 = vmatpush1.msra.mxu0 0.0
    %960 = vmatprep.subr.mxu0 0.0
    %961 = vmatpush1.msra.mxu0 0.0
    %962 = vmatprep.subr.mxu0 0.0
    %963 = vmatpush1.msra.mxu0 0.0
    %964 = vmatprep.subr.mxu0 0.0
    %965 = vmatpush1.msra.mxu0 0.0
    %966 = vmatprep.subr.mxu0 0.0
    %967 = vmatpush1.msra.mxu0 0.0
    %968 = vmatprep.subr.mxu0 0.0
    %969 = vmatpush1.msra.mxu0 0.0
    %970 = vmatprep.subr.mxu0 0.0
    %971 = vmatpush1.msra.mxu0 0.0
    %972 = vmatprep.subr.mxu0 0.0
    %973 = vmatpush1.msra.mxu0 0.0
    %974 = vmatprep.subr.mxu0 0.0
    %975 = vmatpush1.msra.mxu0 0.0
    %976 = vmatprep.mubr.f32.mxu0 0.0
    %977 = vmatmul.mubr.f32.gmra.mrb[0].mxu0 %v910
    %v978 = vpop.f32.mrb[0].mxu0
    %v979 = vadd.f32 0.0, %v978
    %v980 = vpop.f32.mrb[0].mxu0
    %981 = vdwg.mxu0
    %983 = vrot.lane.b32.xlu0 %v399, 120
    %v984 = vpop.permute.xlu0 %983
    %v987 = vsel %vm402, %v904, 0
    %989 = vmatprep.subr.mxu0 0.0
    %990 = vmatpush1.msra.mxu0 %v984
    %991 = vmatprep.subr.mxu0 0.0
    %992 = vmatpush1.msra.mxu0 0.0
    %993 = vmatprep.subr.mxu0 0.0
    %994 = vmatpush1.msra.mxu0 0.0
    %995 = vmatprep.subr.mxu0 0.0
    %996 = vmatpush1.msra.mxu0 0.0
    %997 = vmatprep.subr.mxu0 0.0
    %998 = vmatpush1.msra.mxu0 0.0
    %999 = vmatprep.subr.mxu0 0.0
    %1000 = vmatpush1.msra.mxu0 0.0
    %1001 = vmatprep.subr.mxu0 0.0
    %1002 = vmatpush1.msra.mxu0 0.0
    %1003 = vmatprep.subr.mxu0 0.0
    %1004 = vmatpush1.msra.mxu0 0.0
    %1005 = vmatprep.subr.mxu0 0.0
    %1006 = vmatpush1.msra.mxu0 0.0
    %1007 = vmatprep.subr.mxu0 0.0
    %1008 = vmatpush1.msra.mxu0 0.0
    %1009 = vmatprep.subr.mxu0 0.0
    %1010 = vmatpush1.msra.mxu0 0.0
    %1011 = vmatprep.subr.mxu0 0.0
    %1012 = vmatpush1.msra.mxu0 0.0
    %1013 = vmatprep.subr.mxu0 0.0
    %1014 = vmatpush1.msra.mxu0 0.0
    %1015 = vmatprep.subr.mxu0 0.0
    %1016 = vmatpush1.msra.mxu0 0.0
    %1017 = vmatprep.subr.mxu0 0.0
    %1018 = vmatpush1.msra.mxu0 0.0
    %1019 = vmatprep.subr.mxu0 0.0
    %1020 = vmatpush1.msra.mxu0 0.0
    %1021 = vmatprep.subr.mxu0 0.0
    %1022 = vmatpush1.msra.mxu0 0.0
    %1023 = vmatprep.subr.mxu0 0.0
    %1024 = vmatpush1.msra.mxu0 0.0
    %1025 = vmatprep.subr.mxu0 0.0
    %1026 = vmatpush1.msra.mxu0 0.0
    %1027 = vmatprep.subr.mxu0 0.0
    %1028 = vmatpush1.msra.mxu0 0.0
    %1029 = vmatprep.subr.mxu0 0.0
    %1030 = vmatpush1.msra.mxu0 0.0
    %1031 = vmatprep.subr.mxu0 0.0
    %1032 = vmatpush1.msra.mxu0 0.0
    %1033 = vmatprep.subr.mxu0 0.0
    %1034 = vmatpush1.msra.mxu0 0.0
    %1035 = vmatprep.subr.mxu0 0.0
    %1036 = vmatpush1.msra.mxu0 0.0
    %1037 = vmatprep.subr.mxu0 0.0
    %1038 = vmatpush1.msra.mxu0 0.0
    %1039 = vmatprep.subr.mxu0 0.0
    %1040 = vmatpush1.msra.mxu0 0.0
    %1041 = vmatprep.subr.mxu0 0.0
    %1042 = vmatpush1.msra.mxu0 0.0
    %1043 = vmatprep.subr.mxu0 0.0
    %1044 = vmatpush1.msra.mxu0 0.0
    %1045 = vmatprep.subr.mxu0 0.0
    %1046 = vmatpush1.msra.mxu0 0.0
    %1047 = vmatprep.subr.mxu0 0.0
    %1048 = vmatpush1.msra.mxu0 0.0
    %1049 = vmatprep.subr.mxu0 0.0
    %1050 = vmatpush1.msra.mxu0 0.0
    %1051 = vmatprep.subr.mxu0 0.0
    %1052 = vmatpush1.msra.mxu0 0.0
    %1053 = vmatprep.mubr.f32.mxu0 0.0
    %1054 = vmatmul.mubr.f32.gmra.mrb[0].mxu0 %v987
    %v1055 = vpop.f32.mrb[0].mxu0
    %v1056 = vadd.f32 0.0, %v1055
    %v1057 = vpop.f32.mrb[0].mxu0
    %1058 = vdwg.mxu0
    %1059 = vrot.lane.b32.xlu0 %v236, 112
    %v1060 = vpop.permute.xlu0 %1059
    %1061 = vrot.lane.b32.xlu0 %v315, 112
    %v1062 = vpop.permute.xlu0 %1061
    %v1063 = vsel %vm402, %v1060, 0
    %v1065 = vsel %vm402, %v1062, 0
    %1067 = vmatprep.subr.mxu0 0.0
    %1068 = vmatpush1.xpose.msra.mxu0 %v1065
    %1069 = vmatprep.subr.mxu0 0.0
    %1070 = vmatpush1.xpose.msra.mxu0 0.0
    %1071 = vmatprep.subr.mxu0 0.0
    %1072 = vmatpush1.xpose.msra.mxu0 0.0
    %1073 = vmatprep.subr.mxu0 0.0
    %1074 = vmatpush1.xpose.msra.mxu0 0.0
    %1075 = vmatprep.subr.mxu0 0.0
    %1076 = vmatpush1.xpose.msra.mxu0 0.0
    %1077 = vmatprep.subr.mxu0 0.0
    %1078 = vmatpush1.xpose.msra.mxu0 0.0
    %1079 = vmatprep.subr.mxu0 0.0
    %1080 = vmatpush1.xpose.msra.mxu0 0.0
    %1081 = vmatprep.subr.mxu0 0.0
    %1082 = vmatpush1.xpose.msra.mxu0 0.0
    %1083 = vmatprep.subr.mxu0 0.0
    %1084 = vmatpush1.xpose.msra.mxu0 0.0
    %1085 = vmatprep.subr.mxu0 0.0
    %1086 = vmatpush1.xpose.msra.mxu0 0.0
    %1087 = vmatprep.subr.mxu0 0.0
    %1088 = vmatpush1.xpose.msra.mxu0 0.0
    %1089 = vmatprep.subr.mxu0 0.0
    %1090 = vmatpush1.xpose.msra.mxu0 0.0
    %1091 = vmatprep.subr.mxu0 0.0
    %1092 = vmatpush1.xpose.msra.mxu0 0.0
    %1093 = vmatprep.subr.mxu0 0.0
    %1094 = vmatpush1.xpose.msra.mxu0 0.0
    %1095 = vmatprep.subr.mxu0 0.0
    %1096 = vmatpush1.xpose.msra.mxu0 0.0
    %1097 = vmatprep.subr.mxu0 0.0
    %1098 = vmatpush1.xpose.msra.mxu0 0.0
    %1099 = vmatprep.subr.mxu0 0.0
    %1100 = vmatpush1.xpose.msra.mxu0 0.0
    %1101 = vmatprep.subr.mxu0 0.0
    %1102 = vmatpush1.xpose.msra.mxu0 0.0
    %1103 = vmatprep.subr.mxu0 0.0
    %1104 = vmatpush1.xpose.msra.mxu0 0.0
    %1105 = vmatprep.subr.mxu0 0.0
    %1106 = vmatpush1.xpose.msra.mxu0 0.0
    %1107 = vmatprep.subr.mxu0 0.0
    %1108 = vmatpush1.xpose.msra.mxu0 0.0
    %1109 = vmatprep.subr.mxu0 0.0
    %1110 = vmatpush1.xpose.msra.mxu0 0.0
    %1111 = vmatprep.subr.mxu0 0.0
    %1112 = vmatpush1.xpose.msra.mxu0 0.0
    %1113 = vmatprep.subr.mxu0 0.0
    %1114 = vmatpush1.xpose.msra.mxu0 0.0
    %1115 = vmatprep.subr.mxu0 0.0
    %1116 = vmatpush1.xpose.msra.mxu0 0.0
    %1117 = vmatprep.subr.mxu0 0.0
    %1118 = vmatpush1.xpose.msra.mxu0 0.0
    %1119 = vmatprep.subr.mxu0 0.0
    %1120 = vmatpush1.xpose.msra.mxu0 0.0
    %1121 = vmatprep.subr.mxu0 0.0
    %1122 = vmatpush1.xpose.msra.mxu0 0.0
    %1123 = vmatprep.subr.mxu0 0.0
    %1124 = vmatpush1.xpose.msra.mxu0 0.0
    %1125 = vmatprep.subr.mxu0 0.0
    %1126 = vmatpush1.xpose.msra.mxu0 0.0
    %1127 = vmatprep.subr.mxu0 0.0
    %1128 = vmatpush1.xpose.msra.mxu0 0.0
    %1129 = vmatprep.subr.mxu0 0.0
    %1130 = vmatpush1.xpose.msra.mxu0 0.0
    %1131 = vmatprep.mubr.f32.mxu0 0.0
    %1132 = vmatmul.mubr.f32.gmra.mrb[0].mxu0 %v1063
    %v1133 = vpop.f32.mrb[0].mxu0
    %v1134 = vadd.f32 0.0, %v1133
    %v1135 = vpop.f32.mrb[0].mxu0
    %1136 = vdwg.mxu0
    %1137 = vrot.lane.b32.xlu0 %v241, 112
    %v1138 = vpop.permute.xlu0 %1137
    %1139 = vrot.lane.b32.xlu0 %v320, 112
    %v1140 = vpop.permute.xlu0 %1139
    %v1141 = vsel %vm402, %v1138, 0
    %v1143 = vsel %vm402, %v1140, 0
    %1145 = vmatprep.subr.mxu0 0.0
    %1146 = vmatpush1.xpose.msra.mxu0 %v1143
    %1147 = vmatprep.subr.mxu0 0.0
    %1148 = vmatpush1.xpose.msra.mxu0 0.0
    %1149 = vmatprep.subr.mxu0 0.0
    %1150 = vmatpush1.xpose.msra.mxu0 0.0
    %1151 = vmatprep.subr.mxu0 0.0
    %1152 = vmatpush1.xpose.msra.mxu0 0.0
    %1153 = vmatprep.subr.mxu0 0.0
    %1154 = vmatpush1.xpose.msra.mxu0 0.0
    %1155 = vmatprep.subr.mxu0 0.0
    %1156 = vmatpush1.xpose.msra.mxu0 0.0
    %1157 = vmatprep.subr.mxu0 0.0
    %1158 = vmatpush1.xpose.msra.mxu0 0.0
    %1159 = vmatprep.subr.mxu0 0.0
    %1160 = vmatpush1.xpose.msra.mxu0 0.0
    %1161 = vmatprep.subr.mxu0 0.0
    %1162 = vmatpush1.xpose.msra.mxu0 0.0
    %1163 = vmatprep.subr.mxu0 0.0
    %1164 = vmatpush1.xpose.msra.mxu0 0.0
    %1165 = vmatprep.subr.mxu0 0.0
    %1166 = vmatpush1.xpose.msra.mxu0 0.0
    %1167 = vmatprep.subr.mxu0 0.0
    %1168 = vmatpush1.xpose.msra.mxu0 0.0
    %1169 = vmatprep.subr.mxu0 0.0
    %1170 = vmatpush1.xpose.msra.mxu0 0.0
    %1171 = vmatprep.subr.mxu0 0.0
    %1172 = vmatpush1.xpose.msra.mxu0 0.0
    %1173 = vmatprep.subr.mxu0 0.0
    %1174 = vmatpush1.xpose.msra.mxu0 0.0
    %1175 = vmatprep.subr.mxu0 0.0
    %1176 = vmatpush1.xpose.msra.mxu0 0.0
    %1177 = vmatprep.subr.mxu0 0.0
    %1178 = vmatpush1.xpose.msra.mxu0 0.0
    %1179 = vmatprep.subr.mxu0 0.0
    %1180 = vmatpush1.xpose.msra.mxu0 0.0
    %1181 = vmatprep.subr.mxu0 0.0
    %1182 = vmatpush1.xpose.msra.mxu0 0.0
    %1183 = vmatprep.subr.mxu0 0.0
    %1184 = vmatpush1.xpose.msra.mxu0 0.0
    %1185 = vmatprep.subr.mxu0 0.0
    %1186 = vmatpush1.xpose.msra.mxu0 0.0
    %1187 = vmatprep.subr.mxu0 0.0
    %1188 = vmatpush1.xpose.msra.mxu0 0.0
    %1189 = vmatprep.subr.mxu0 0.0
    %1190 = vmatpush1.xpose.msra.mxu0 0.0
    %1191 = vmatprep.subr.mxu0 0.0
    %1192 = vmatpush1.xpose.msra.mxu0 0.0
    %1193 = vmatprep.subr.mxu0 0.0
    %1194 = vmatpush1.xpose.msra.mxu0 0.0
    %1195 = vmatprep.subr.mxu0 0.0
    %1196 = vmatpush1.xpose.msra.mxu0 0.0
    %1197 = vmatprep.subr.mxu0 0.0
    %1198 = vmatpush1.xpose.msra.mxu0 0.0
    %1199 = vmatprep.subr.mxu0 0.0
    %1200 = vmatpush1.xpose.msra.mxu0 0.0
    %1201 = vmatprep.subr.mxu0 0.0
    %1202 = vmatpush1.xpose.msra.mxu0 0.0
    %1203 = vmatprep.subr.mxu0 0.0
    %1204 = vmatpush1.xpose.msra.mxu0 0.0
    %1205 = vmatprep.subr.mxu0 0.0
    %1206 = vmatpush1.xpose.msra.mxu0 0.0
    %1207 = vmatprep.subr.mxu0 0.0
    %1208 = vmatpush1.xpose.msra.mxu0 0.0
    %1209 = vmatprep.mubr.f32.mxu0 0.0
    %1210 = vmatmul.mubr.f32.gmra.mrb[0].mxu0 %v1141
    %v1211 = vpop.f32.mrb[0].mxu0
    %v1212 = vadd.f32 0.0, %v1211
    %v1213 = vpop.f32.mrb[0].mxu0
    %1214 = vdwg.mxu0
    %v1215 = vsel %vm402, %v1134, -inf
    %1216 = vmax.xlane.f32.xlu0 %v1215
    %v1217 = vpop.xlane.xlu0 %1216
    %v1218 = vsel %vm402, %v1212, -inf
    %1219 = vmax.xlane.f32.xlu0 %v1218
    %v1220 = vpop.xlane.xlu0 %1219
    %v1221 = vsub.f32 %v1134, %v1217
    %v1222 = vsub.f32 %v1212, %v1220
    %v1223 = vmul.f32 %v1221, 1.442695
    %v1224 = vpow.pop %v1223
    %v1225 = vmul.f32 %v1222, 1.442695
    %v1226 = vpow.pop %v1225
    %v1227 = vsel %vm402, %v1224, 0.0
    %1228 = vadd.xlane.f32.xlu0 %v1227
    %v1229 = vpop.xlane.xlu0 %1228
    %v1230 = vsel %vm402, %v1226, 0.0
    %1231 = vadd.xlane.f32.xlu0 %v1230
    %v1232 = vpop.xlane.xlu0 %1231
    %v1233 = vrcp.pop %v1229
    %v1234 = vmul.f32 1.0, %v1233
    %v1235 = vrcp.pop %v1232
    %v1236 = vmul.f32 1.0, %v1235
    %v1237 = vmul.f32 %v1224, %v1234
    %v1238 = vmul.f32 %v1226, %v1236
    %1239 = vrot.lane.b32.xlu0 %v394, 112
    %v1240 = vpop.permute.xlu0 %1239
    %v1243 = vsel %vm402, %v1237, 0
    %1245 = vmatprep.subr.mxu0 0.0
    %1246 = vmatpush1.msra.mxu0 %v1240
    %1247 = vmatprep.subr.mxu0 0.0
    %1248 = vmatpush1.msra.mxu0 0.0
    %1249 = vmatprep.subr.mxu0 0.0
    %1250 = vmatpush1.msra.mxu0 0.0
    %1251 = vmatprep.subr.mxu0 0.0
    %1252 = vmatpush1.msra.mxu0 0.0
    %1253 = vmatprep.subr.mxu0 0.0
    %1254 = vmatpush1.msra.mxu0 0.0
    %1255 = vmatprep.subr.mxu0 0.0
    %1256 = vmatpush1.msra.mxu0 0.0
    %1257 = vmatprep.subr.mxu0 0.0
    %1258 = vmatpush1.msra.mxu0 0.0
    %1259 = vmatprep.subr.mxu0 0.0
    %1260 = vmatpush1.msra.mxu0 0.0
    %1261 = vmatprep.subr.mxu0 0.0
    %1262 = vmatpush1.msra.mxu0 0.0
    %1263 = vmatprep.subr.mxu0 0.0
    %1264 = vmatpush1.msra.mxu0 0.0
    %1265 = vmatprep.subr.mxu0 0.0
    %1266 = vmatpush1.msra.mxu0 0.0
    %1267 = vmatprep.subr.mxu0 0.0
    %1268 = vmatpush1.msra.mxu0 0.0
    %1269 = vmatprep.subr.mxu0 0.0
    %1270 = vmatpush1.msra.mxu0 0.0
    %1271 = vmatprep.subr.mxu0 0.0
    %1272 = vmatpush1.msra.mxu0 0.0
    %1273 = vmatprep.subr.mxu0 0.0
    %1274 = vmatpush1.msra.mxu0 0.0
    %1275 = vmatprep.subr.mxu0 0.0
    %1276 = vmatpush1.msra.mxu0 0.0
    %1277 = vmatprep.subr.mxu0 0.0
    %1278 = vmatpush1.msra.mxu0 0.0
    %1279 = vmatprep.subr.mxu0 0.0
    %1280 = vmatpush1.msra.mxu0 0.0
    %1281 = vmatprep.subr.mxu0 0.0
    %1282 = vmatpush1.msra.mxu0 0.0
    %1283 = vmatprep.subr.mxu0 0.0
    %1284 = vmatpush1.msra.mxu0 0.0
    %1285 = vmatprep.subr.mxu0 0.0
    %1286 = vmatpush1.msra.mxu0 0.0
    %1287 = vmatprep.subr.mxu0 0.0
    %1288 = vmatpush1.msra.mxu0 0.0
    %1289 = vmatprep.subr.mxu0 0.0
    %1290 = vmatpush1.msra.mxu0 0.0
    %1291 = vmatprep.subr.mxu0 0.0
    %1292 = vmatpush1.msra.mxu0 0.0
    %1293 = vmatprep.subr.mxu0 0.0
    %1294 = vmatpush1.msra.mxu0 0.0
    %1295 = vmatprep.subr.mxu0 0.0
    %1296 = vmatpush1.msra.mxu0 0.0
    %1297 = vmatprep.subr.mxu0 0.0
    %1298 = vmatpush1.msra.mxu0 0.0
    %1299 = vmatprep.subr.mxu0 0.0
    %1300 = vmatpush1.msra.mxu0 0.0
    %1301 = vmatprep.subr.mxu0 0.0
    %1302 = vmatpush1.msra.mxu0 0.0
    %1303 = vmatprep.subr.mxu0 0.0
    %1304 = vmatpush1.msra.mxu0 0.0
    %1305 = vmatprep.subr.mxu0 0.0
    %1306 = vmatpush1.msra.mxu0 0.0
    %1307 = vmatprep.subr.mxu0 0.0
    %1308 = vmatpush1.msra.mxu0 0.0
    %1309 = vmatprep.mubr.f32.mxu0 0.0
    %1310 = vmatmul.mubr.f32.gmra.mrb[0].mxu0 %v1243
    %v1311 = vpop.f32.mrb[0].mxu0
    %v1312 = vadd.f32 0.0, %v1311
    %v1313 = vpop.f32.mrb[0].mxu0
    %1314 = vdwg.mxu0
    %1315 = vrot.lane.b32.xlu0 %v399, 112
    %v1316 = vpop.permute.xlu0 %1315
    %v1319 = vsel %vm402, %v1238, 0
    %1321 = vmatprep.subr.mxu0 0.0
    %1322 = vmatpush1.msra.mxu0 %v1316
    %1323 = vmatprep.subr.mxu0 0.0
    %1324 = vmatpush1.msra.mxu0 0.0
    %1325 = vmatprep.subr.mxu0 0.0
    %1326 = vmatpush1.msra.mxu0 0.0
    %1327 = vmatprep.subr.mxu0 0.0
    %1328 = vmatpush1.msra.mxu0 0.0
    %1329 = vmatprep.subr.mxu0 0.0
    %1330 = vmatpush1.msra.mxu0 0.0
    %1331 = vmatprep.subr.mxu0 0.0
    %1332 = vmatpush1.msra.mxu0 0.0
    %1333 = vmatprep.subr.mxu0 0.0
    %1334 = vmatpush1.msra.mxu0 0.0
    %1335 = vmatprep.subr.mxu0 0.0
    %1336 = vmatpush1.msra.mxu0 0.0
    %1337 = vmatprep.subr.mxu0 0.0
    %1338 = vmatpush1.msra.mxu0 0.0
    %1339 = vmatprep.subr.mxu0 0.0
    %1340 = vmatpush1.msra.mxu0 0.0
    %1341 = vmatprep.subr.mxu0 0.0
    %1342 = vmatpush1.msra.mxu0 0.0
    %1343 = vmatprep.subr.mxu0 0.0
    %1344 = vmatpush1.msra.mxu0 0.0
    %1345 = vmatprep.subr.mxu0 0.0
    %1346 = vmatpush1.msra.mxu0 0.0
    %1347 = vmatprep.subr.mxu0 0.0
    %1348 = vmatpush1.msra.mxu0 0.0
    %1349 = vmatprep.subr.mxu0 0.0
    %1350 = vmatpush1.msra.mxu0 0.0
    %1351 = vmatprep.subr.mxu0 0.0
    %1352 = vmatpush1.msra.mxu0 0.0
    %1353 = vmatprep.subr.mxu0 0.0
    %1354 = vmatpush1.msra.mxu0 0.0
    %1355 = vmatprep.subr.mxu0 0.0
    %1356 = vmatpush1.msra.mxu0 0.0
    %1357 = vmatprep.subr.mxu0 0.0
    %1358 = vmatpush1.msra.mxu0 0.0
    %1359 = vmatprep.subr.mxu0 0.0
    %1360 = vmatpush1.msra.mxu0 0.0
    %1361 = vmatprep.subr.mxu0 0.0
    %1362 = vmatpush1.msra.mxu0 0.0
    %1363 = vmatprep.subr.mxu0 0.0
    %1364 = vmatpush1.msra.mxu0 0.0
    %1365 = vmatprep.subr.mxu0 0.0
    %1366 = vmatpush1.msra.mxu0 0.0
    %1367 = vmatprep.subr.mxu0 0.0
    %1368 = vmatpush1.msra.mxu0 0.0
    %1369 = vmatprep.subr.mxu0 0.0
    %1370 = vmatpush1.msra.mxu0 0.0
    %1371 = vmatprep.subr.mxu0 0.0
    %1372 = vmatpush1.msra.mxu0 0.0
    %1373 = vmatprep.subr.mxu0 0.0
    %1374 = vmatpush1.msra.mxu0 0.0
    %1375 = vmatprep.subr.mxu0 0.0
    %1376 = vmatpush1.msra.mxu0 0.0
    %1377 = vmatprep.subr.mxu0 0.0
    %1378 = vmatpush1.msra.mxu0 0.0
    %1379 = vmatprep.subr.mxu0 0.0
    %1380 = vmatpush1.msra.mxu0 0.0
    %1381 = vmatprep.subr.mxu0 0.0
    %1382 = vmatpush1.msra.mxu0 0.0
    %1383 = vmatprep.subr.mxu0 0.0
    %1384 = vmatpush1.msra.mxu0 0.0
    %1385 = vmatprep.mubr.f32.mxu0 0.0
    %1386 = vmatmul.mubr.f32.gmra.mrb[0].mxu0 %v1319
    %v1387 = vpop.f32.mrb[0].mxu0
    %v1388 = vadd.f32 0.0, %v1387
    %v1389 = vpop.f32.mrb[0].mxu0
    %1390 = vdwg.mxu0
    %1391 = vrot.lane.b32.xlu0 %v236, 104
    %v1392 = vpop.permute.xlu0 %1391
    %1393 = vrot.lane.b32.xlu0 %v315, 104
    %v1394 = vpop.permute.xlu0 %1393
    %v1395 = vsel %vm402, %v1392, 0
    %v1397 = vsel %vm402, %v1394, 0
    %1399 = vmatprep.subr.mxu0 0.0
    %1400 = vmatpush1.xpose.msra.mxu0 %v1397
    %1401 = vmatprep.subr.mxu0 0.0
    %1402 = vmatpush1.xpose.msra.mxu0 0.0
    %1403 = vmatprep.subr.mxu0 0.0
    %1404 = vmatpush1.xpose.msra.mxu0 0.0
    %1405 = vmatprep.subr.mxu0 0.0
    %1406 = vmatpush1.xpose.msra.mxu0 0.0
    %1407 = vmatprep.subr.mxu0 0.0
    %1408 = vmatpush1.xpose.msra.mxu0 0.0
    %1409 = vmatprep.subr.mxu0 0.0
    %1410 = vmatpush1.xpose.msra.mxu0 0.0
    %1411 = vmatprep.subr.mxu0 0.0
    %1412 = vmatpush1.xpose.msra.mxu0 0.0
    %1413 = vmatprep.subr.mxu0 0.0
    %1414 = vmatpush1.xpose.msra.mxu0 0.0
    %1415 = vmatprep.subr.mxu0 0.0
    %1416 = vmatpush1.xpose.msra.mxu0 0.0
    %1417 = vmatprep.subr.mxu0 0.0
    %1418 = vmatpush1.xpose.msra.mxu0 0.0
    %1419 = vmatprep.subr.mxu0 0.0
    %1420 = vmatpush1.xpose.msra.mxu0 0.0
    %1421 = vmatprep.subr.mxu0 0.0
    %1422 = vmatpush1.xpose.msra.mxu0 0.0
    %1423 = vmatprep.subr.mxu0 0.0
    %1424 = vmatpush1.xpose.msra.mxu0 0.0
    %1425 = vmatprep.subr.mxu0 0.0
    %1426 = vmatpush1.xpose.msra.mxu0 0.0
    %1427 = vmatprep.subr.mxu0 0.0
    %1428 = vmatpush1.xpose.msra.mxu0 0.0
    %1429 = vmatprep.subr.mxu0 0.0
    %1430 = vmatpush1.xpose.msra.mxu0 0.0
    %1431 = vmatprep.subr.mxu0 0.0
    %1432 = vmatpush1.xpose.msra.mxu0 0.0
    %1433 = vmatprep.subr.mxu0 0.0
    %1434 = vmatpush1.xpose.msra.mxu0 0.0
    %1435 = vmatprep.subr.mxu0 0.0
    %1436 = vmatpush1.xpose.msra.mxu0 0.0
    %1437 = vmatprep.subr.mxu0 0.0
    %1438 = vmatpush1.xpose.msra.mxu0 0.0
    %1439 = vmatprep.subr.mxu0 0.0
    %1440 = vmatpush1.xpose.msra.mxu0 0.0
    %1441 = vmatprep.subr.mxu0 0.0
    %1442 = vmatpush1.xpose.msra.mxu0 0.0
    %1443 = vmatprep.subr.mxu0 0.0
    %1444 = vmatpush1.xpose.msra.mxu0 0.0
    %1445 = vmatprep.subr.mxu0 0.0
    %1446 = vmatpush1.xpose.msra.mxu0 0.0
    %1447 = vmatprep.subr.mxu0 0.0
    %1448 = vmatpush1.xpose.msra.mxu0 0.0
    %1449 = vmatprep.subr.mxu0 0.0
    %1450 = vmatpush1.xpose.msra.mxu0 0.0
    %1451 = vmatprep.subr.mxu0 0.0
    %1452 = vmatpush1.xpose.msra.mxu0 0.0
    %1453 = vmatprep.subr.mxu0 0.0
    %1454 = vmatpush1.xpose.msra.mxu0 0.0
    %1455 = vmatprep.subr.mxu0 0.0
    %1456 = vmatpush1.xpose.msra.mxu0 0.0
    %1457 = vmatprep.subr.mxu0 0.0
    %1458 = vmatpush1.xpose.msra.mxu0 0.0
    %1459 = vmatprep.subr.mxu0 0.0
    %1460 = vmatpush1.xpose.msra.mxu0 0.0
    %1461 = vmatprep.subr.mxu0 0.0
    %1462 = vmatpush1.xpose.msra.mxu0 0.0
    %1463 = vmatprep.mubr.f32.mxu0 0.0
    %1464 = vmatmul.mubr.f32.gmra.mrb[0].mxu0 %v1395
    %v1465 = vpop.f32.mrb[0].mxu0
    %v1466 = vadd.f32 0.0, %v1465
    %v1467 = vpop.f32.mrb[0].mxu0
    %1468 = vdwg.mxu0
    %1469 = vrot.lane.b32.xlu0 %v241, 104
    %v1470 = vpop.permute.xlu0 %1469
    %1471 = vrot.lane.b32.xlu0 %v320, 104
    %v1472 = vpop.permute.xlu0 %1471
    %v1473 = vsel %vm402, %v1470, 0
    %v1475 = vsel %vm402, %v1472, 0
    %1477 = vmatprep.subr.mxu0 0.0
    %1478 = vmatpush1.xpose.msra.mxu0 %v1475
    %1479 = vmatprep.subr.mxu0 0.0
    %1480 = vmatpush1.xpose.msra.mxu0 0.0
    %1481 = vmatprep.subr.mxu0 0.0
    %1482 = vmatpush1.xpose.msra.mxu0 0.0
    %1483 = vmatprep.subr.mxu0 0.0
    %1484 = vmatpush1.xpose.msra.mxu0 0.0
    %1485 = vmatprep.subr.mxu0 0.0
    %1486 = vmatpush1.xpose.msra.mxu0 0.0
    %1487 = vmatprep.subr.mxu0 0.0
    %1488 = vmatpush1.xpose.msra.mxu0 0.0
    %1489 = vmatprep.subr.mxu0 0.0
    %1490 = vmatpush1.xpose.msra.mxu0 0.0
    %1491 = vmatprep.subr.mxu0 0.0
    %1492 = vmatpush1.xpose.msra.mxu0 0.0
    %1493 = vmatprep.subr.mxu0 0.0
    %1494 = vmatpush1.xpose.msra.mxu0 0.0
    %1495 = vmatprep.subr.mxu0 0.0
    %1496 = vmatpush1.xpose.msra.mxu0 0.0
    %1497 = vmatprep.subr.mxu0 0.0
    %1498 = vmatpush1.xpose.msra.mxu0 0.0
    %1499 = vmatprep.subr.mxu0 0.0
    %1500 = vmatpush1.xpose.msra.mxu0 0.0
    %1501 = vmatprep.subr.mxu0 0.0
    %1502 = vmatpush1.xpose.msra.mxu0 0.0
    %1503 = vmatprep.subr.mxu0 0.0
    %1504 = vmatpush1.xpose.msra.mxu0 0.0
    %1505 = vmatprep.subr.mxu0 0.0
    %1506 = vmatpush1.xpose.msra.mxu0 0.0
    %1507 = vmatprep.subr.mxu0 0.0
    %1508 = vmatpush1.xpose.msra.mxu0 0.0
    %1509 = vmatprep.subr.mxu0 0.0
    %1510 = vmatpush1.xpose.msra.mxu0 0.0
    %1511 = vmatprep.subr.mxu0 0.0
    %1512 = vmatpush1.xpose.msra.mxu0 0.0
    %1513 = vmatprep.subr.mxu0 0.0
    %1514 = vmatpush1.xpose.msra.mxu0 0.0
    %1515 = vmatprep.subr.mxu0 0.0
    %1516 = vmatpush1.xpose.msra.mxu0 0.0
    %1517 = vmatprep.subr.mxu0 0.0
    %1518 = vmatpush1.xpose.msra.mxu0 0.0
    %1519 = vmatprep.subr.mxu0 0.0
    %1520 = vmatpush1.xpose.msra.mxu0 0.0
    %1521 = vmatprep.subr.mxu0 0.0
    %1522 = vmatpush1.xpose.msra.mxu0 0.0
    %1523 = vmatprep.subr.mxu0 0.0
    %1524 = vmatpush1.xpose.msra.mxu0 0.0
    %1525 = vmatprep.subr.mxu0 0.0
    %1526 = vmatpush1.xpose.msra.mxu0 0.0
    %1527 = vmatprep.subr.mxu0 0.0
    %1528 = vmatpush1.xpose.msra.mxu0 0.0
    %1529 = vmatprep.subr.mxu0 0.0
    %1530 = vmatpush1.xpose.msra.mxu0 0.0
    %1531 = vmatprep.subr.mxu0 0.0
    %1532 = vmatpush1.xpose.msra.mxu0 0.0
    %1533 = vmatprep.subr.mxu0 0.0
    %1534 = vmatpush1.xpose.msra.mxu0 0.0
    %1535 = vmatprep.subr.mxu0 0.0
    %1536 = vmatpush1.xpose.msra.mxu0 0.0
    %1537 = vmatprep.subr.mxu0 0.0
    %1538 = vmatpush1.xpose.msra.mxu0 0.0
    %1539 = vmatprep.subr.mxu0 0.0
    %1540 = vmatpush1.xpose.msra.mxu0 0.0
    %1541 = vmatprep.mubr.f32.mxu0 0.0
    %1542 = vmatmul.mubr.f32.gmra.mrb[0].mxu0 %v1473
    %v1543 = vpop.f32.mrb[0].mxu0
    %v1544 = vadd.f32 0.0, %v1543
    %v1545 = vpop.f32.mrb[0].mxu0
    %1546 = vdwg.mxu0
    %v1547 = vsel %vm402, %v1466, -inf
    %1548 = vmax.xlane.f32.xlu0 %v1547
    %v1549 = vpop.xlane.xlu0 %1548
    %v1550 = vsel %vm402, %v1544, -inf
    %1551 = vmax.xlane.f32.xlu0 %v1550
    %v1552 = vpop.xlane.xlu0 %1551
    %v1553 = vsub.f32 %v1466, %v1549
    %v1554 = vsub.f32 %v1544, %v1552
    %v1555 = vmul.f32 %v1553, 1.442695
    %v1556 = vpow.pop %v1555
    %v1557 = vmul.f32 %v1554, 1.442695
    %v1558 = vpow.pop %v1557
    %v1559 = vsel %vm402, %v1556, 0.0
    %1560 = vadd.xlane.f32.xlu0 %v1559
    %v1561 = vpop.xlane.xlu0 %1560
    %v1562 = vsel %vm402, %v1558, 0.0
    %1563 = vadd.xlane.f32.xlu0 %v1562
    %v1564 = vpop.xlane.xlu0 %1563
    %v1565 = vrcp.pop %v1561
    %v1566 = vmul.f32 1.0, %v1565
    %v1567 = vrcp.pop %v1564
    %v1568 = vmul.f32 1.0, %v1567
    %v1569 = vmul.f32 %v1556, %v1566
    %v1570 = vmul.f32 %v1558, %v1568
    %1571 = vrot.lane.b32.xlu0 %v394, 104
    %v1572 = vpop.permute.xlu0 %1571
    %v1575 = vsel %vm402, %v1569, 0
    %1577 = vmatprep.subr.mxu0 0.0
    %1578 = vmatpush1.msra.mxu0 %v1572
    %1579 = vmatprep.subr.mxu0 0.0
    %1580 = vmatpush1.msra.mxu0 0.0
    %1581 = vmatprep.subr.mxu0 0.0
    %1582 = vmatpush1.msra.mxu0 0.0
    %1583 = vmatprep.subr.mxu0 0.0
    %1584 = vmatpush1.msra.mxu0 0.0
    %1585 = vmatprep.subr.mxu0 0.0
    %1586 = vmatpush1.msra.mxu0 0.0
    %1587 = vmatprep.subr.mxu0 0.0
    %1588 = vmatpush1.msra.mxu0 0.0
    %1589 = vmatprep.subr.mxu0 0.0
    %1590 = vmatpush1.msra.mxu0 0.0
    %1591 = vmatprep.subr.mxu0 0.0
    %1592 = vmatpush1.msra.mxu0 0.0
    %1593 = vmatprep.subr.mxu0 0.0
    %1594 = vmatpush1.msra.mxu0 0.0
    %1595 = vmatprep.subr.mxu0 0.0
    %1596 = vmatpush1.msra.mxu0 0.0
    %1597 = vmatprep.subr.mxu0 0.0
    %1598 = vmatpush1.msra.mxu0 0.0
    %1599 = vmatprep.subr.mxu0 0.0
    %1600 = vmatpush1.msra.mxu0 0.0
    %1601 = vmatprep.subr.mxu0 0.0
    %1602 = vmatpush1.msra.mxu0 0.0
    %1603 = vmatprep.subr.mxu0 0.0
    %1604 = vmatpush1.msra.mxu0 0.0
    %1605 = vmatprep.subr.mxu0 0.0
    %1606 = vmatpush1.msra.mxu0 0.0
    %1607 = vmatprep.subr.mxu0 0.0
    %1608 = vmatpush1.msra.mxu0 0.0
    %1609 = vmatprep.subr.mxu0 0.0
    %1610 = vmatpush1.msra.mxu0 0.0
    %1611 = vmatprep.subr.mxu0 0.0
    %1612 = vmatpush1.msra.mxu0 0.0
    %1613 = vmatprep.subr.mxu0 0.0
    %1614 = vmatpush1.msra.mxu0 0.0
    %1615 = vmatprep.subr.mxu0 0.0
    %1616 = vmatpush1.msra.mxu0 0.0
    %1617 = vmatprep.subr.mxu0 0.0
    %1618 = vmatpush1.msra.mxu0 0.0
    %1619 = vmatprep.subr.mxu0 0.0
    %1620 = vmatpush1.msra.mxu0 0.0
    %1621 = vmatprep.subr.mxu0 0.0
    %1622 = vmatpush1.msra.mxu0 0.0
    %1623 = vmatprep.subr.mxu0 0.0
    %1624 = vmatpush1.msra.mxu0 0.0
    %1625 = vmatprep.subr.mxu0 0.0
    %1626 = vmatpush1.msra.mxu0 0.0
    %1627 = vmatprep.subr.mxu0 0.0
    %1628 = vmatpush1.msra.mxu0 0.0
    %1629 = vmatprep.subr.mxu0 0.0
    %1630 = vmatpush1.msra.mxu0 0.0
    %1631 = vmatprep.subr.mxu0 0.0
    %1632 = vmatpush1.msra.mxu0 0.0
    %1633 = vmatprep.subr.mxu0 0.0
    %1634 = vmatpush1.msra.mxu0 0.0
    %1635 = vmatprep.subr.mxu0 0.0
    %1636 = vmatpush1.msra.mxu0 0.0
    %1637 = vmatprep.subr.mxu0 0.0
    %1638 = vmatpush1.msra.mxu0 0.0
    %1639 = vmatprep.subr.mxu0 0.0
    %1640 = vmatpush1.msra.mxu0 0.0
    %1641 = vmatprep.mubr.f32.mxu0 0.0
    %1642 = vmatmul.mubr.f32.gmra.mrb[0].mxu0 %v1575
    %v1643 = vpop.f32.mrb[0].mxu0
    %v1644 = vadd.f32 0.0, %v1643
    %v1645 = vpop.f32.mrb[0].mxu0
    %1646 = vdwg.mxu0
    %1647 = vrot.lane.b32.xlu0 %v399, 104
    %v1648 = vpop.permute.xlu0 %1647
    %v1651 = vsel %vm402, %v1570, 0
    %1653 = vmatprep.subr.mxu0 0.0
    %1654 = vmatpush1.msra.mxu0 %v1648
    %1655 = vmatprep.subr.mxu0 0.0
    %1656 = vmatpush1.msra.mxu0 0.0
    %1657 = vmatprep.subr.mxu0 0.0
    %1658 = vmatpush1.msra.mxu0 0.0
    %1659 = vmatprep.subr.mxu0 0.0
    %1660 = vmatpush1.msra.mxu0 0.0
    %1661 = vmatprep.subr.mxu0 0.0
    %1662 = vmatpush1.msra.mxu0 0.0
    %1663 = vmatprep.subr.mxu0 0.0
    %1664 = vmatpush1.msra.mxu0 0.0
    %1665 = vmatprep.subr.mxu0 0.0
    %1666 = vmatpush1.msra.mxu0 0.0
    %1667 = vmatprep.subr.mxu0 0.0
    %1668 = vmatpush1.msra.mxu0 0.0
    %1669 = vmatprep.subr.mxu0 0.0
    %1670 = vmatpush1.msra.mxu0 0.0
    %1671 = vmatprep.subr.mxu0 0.0
    %1672 = vmatpush1.msra.mxu0 0.0
    %1673 = vmatprep.subr.mxu0 0.0
    %1674 = vmatpush1.msra.mxu0 0.0
    %1675 = vmatprep.subr.mxu0 0.0
    %1676 = vmatpush1.msra.mxu0 0.0
    %1677 = vmatprep.subr.mxu0 0.0
    %1678 = vmatpush1.msra.mxu0 0.0
    %1679 = vmatprep.subr.mxu0 0.0
    %1680 = vmatpush1.msra.mxu0 0.0
    %1681 = vmatprep.subr.mxu0 0.0
    %1682 = vmatpush1.msra.mxu0 0.0
    %1683 = vmatprep.subr.mxu0 0.0
    %1684 = vmatpush1.msra.mxu0 0.0
    %1685 = vmatprep.subr.mxu0 0.0
    %1686 = vmatpush1.msra.mxu0 0.0
    %1687 = vmatprep.subr.mxu0 0.0
    %1688 = vmatpush1.msra.mxu0 0.0
    %1689 = vmatprep.subr.mxu0 0.0
    %1690 = vmatpush1.msra.mxu0 0.0
    %1691 = vmatprep.subr.mxu0 0.0
    %1692 = vmatpush1.msra.mxu0 0.0
    %1693 = vmatprep.subr.mxu0 0.0
    %1694 = vmatpush1.msra.mxu0 0.0
    %1695 = vmatprep.subr.mxu0 0.0
    %1696 = vmatpush1.msra.mxu0 0.0
    %1697 = vmatprep.subr.mxu0 0.0
    %1698 = vmatpush1.msra.mxu0 0.0
    %1699 = vmatprep.subr.mxu0 0.0
    %1700 = vmatpush1.msra.mxu0 0.0
    %1701 = vmatprep.subr.mxu0 0.0
    %1702 = vmatpush1.msra.mxu0 0.0
    %1703 = vmatprep.subr.mxu0 0.0
    %1704 = vmatpush1.msra.mxu0 0.0
    %1705 = vmatprep.subr.mxu0 0.0
    %1706 = vmatpush1.msra.mxu0 0.0
    %1707 = vmatprep.subr.mxu0 0.0
    %1708 = vmatpush1.msra.mxu0 0.0
    %1709 = vmatprep.subr.mxu0 0.0
    %1710 = vmatpush1.msra.mxu0 0.0
    %1711 = vmatprep.subr.mxu0 0.0
    %1712 = vmatpush1.msra.mxu0 0.0
    %1713 = vmatprep.subr.mxu0 0.0
    %1714 = vmatpush1.msra.mxu0 0.0
    %1715 = vmatprep.subr.mxu0 0.0
    %1716 = vmatpush1.msra.mxu0 0.0
    %1717 = vmatprep.mubr.f32.mxu0 0.0
    %1718 = vmatmul.mubr.f32.gmra.mrb[0].mxu0 %v1651
    %v1719 = vpop.f32.mrb[0].mxu0
    %v1720 = vadd.f32 0.0, %v1719
    %v1721 = vpop.f32.mrb[0].mxu0
    %1722 = vdwg.mxu0
    %1725 = vrot.lane.b32.xlu0 %v979, 8
    %v1726 = vpop.permute.xlu0 %1725
    %1727 = vrot.lane.b32.xlu0 %v1056, 8
    %v1728 = vpop.permute.xlu0 %1727
    %1733 = vrot.lane.b32.xlu0 %v1312, 16
    %v1734 = vpop.permute.xlu0 %1733
    %1735 = vrot.lane.b32.xlu0 %v1388, 16
    %v1736 = vpop.permute.xlu0 %1735
    %1741 = vrot.lane.b32.xlu0 %v1644, 24
    %v1742 = vpop.permute.xlu0 %1741
    %1743 = vrot.lane.b32.xlu0 %v1720, 24
    %v1744 = vpop.permute.xlu0 %1743
    %v1747 = vsel %vm402, %v649, %v1726
    %v1748 = vsel %vm402, %v722, %v1728
    %vm1749 = vcmask 130048
    %v1750 = vsel %vm1749, %v1747, %v1734
    %v1751 = vsel %vm1749, %v1748, %v1736
    %vm1752 = vcmask 195584
    %v1753 = vsel %vm1752, %v1750, %v1742
    %v1754 = vsel %vm1752, %v1751, %v1744
    %v1755 = vadd.f32 %v157, %v1753
    %v1756 = vadd.f32 %v158, %v1754
    %v1757 = vld [vmem:[%s6] sm:$0x1]
    %v1758 = vld [vmem:[%s7] sm:$0x1]
    %v1759 = vsel %vm115, %v1755, 0.0
    %1760 = vadd.xlane.f32.xlu0 %v1759
    %v1761 = vpop.xlane.xlu0 %1760
    %v1762 = vsel %vm115, %v1756, 0.0
    %1763 = vadd.xlane.f32.xlu0 %v1762
    %v1764 = vpop.xlane.xlu0 %1763
    %v1765 = vmul.f32 %v1761, %v122
    %v1766 = vmul.f32 %v1764, %v122
    %v1767 = vsub.f32 %v1755, %v1765
    %v1768 = vsub.f32 %v1756, %v1766
    %v1769 = vmul.f32 %v1767, %v1767
    %v1770 = vmul.f32 %v1768, %v1768
    %v1771 = vsel %vm115, %v1769, 0.0
    %1772 = vadd.xlane.f32.xlu0 %v1771
    %v1773 = vpop.xlane.xlu0 %1772
    %v1774 = vsel %vm115, %v1770, 0.0
    %1775 = vadd.xlane.f32.xlu0 %v1774
    %v1776 = vpop.xlane.xlu0 %1775
    %v1777 = vmul.f32 %v1773, %v122
    %v1778 = vmul.f32 %v1776, %v122
    %v1779 = vadd.f32 %v1777, 1e-05
    %v1780 = vadd.f32 %v1778, 1e-05
    %v1781 = vrsqrt.pop %v1779
    %v1782 = vrsqrt.pop %v1780
    %v1783 = vmul.f32 %v1767, %v1781
    %v1784 = vmul.f32 %v1768, %v1782
    %v1786 = vlaneseq
    %v1787 = vshrl.u32 %v1786, 7
    %v1788 = vsub.s32 0, %v1787
    %v1789 = vrot.slane %v1757, %v1788
    %v1791 = vmul.f32 %v1783, %v1789
    %v1792 = vmul.f32 %v1784, %v1789
    %v1794 = vlaneseq
    %v1795 = vshrl.u32 %v1794, 7
    %v1796 = vsub.s32 0, %v1795
    %v1797 = vrot.slane %v1758, %v1796
    %v1799 = vadd.f32 %v1791, %v1797
    %v1800 = vadd.f32 %v1792, %v1797
    %v1801 = vld [vmem:[#allocation10] sm:$0xff]
    %v1802 = vld [vmem:[#allocation10 + $0x8] sm:$0xff]
    %v1803 = vld [vmem:[#allocation10 + $0x10] sm:$0xff]
    %v1804 = vld [vmem:[#allocation10 + $0x18] sm:$0xff]
    %v1805 = vld [vmem:[%s9] sm:$0x1]
    %v1807 = vlaneseq
    %v1808 = vshrl.u32 %v1807, 7
    %v1809 = vsub.s32 0, %v1808
    %v1810 = vrot.slane %v1805, %v1809
    %v1813 = vsel %vm115, %v1799, 0
    %v1816 = vsel %vm115, %v1800, 0
    %1818 = vmatprep.subr.mxu0 0.0
    %1819 = vmatpush1.msra.mxu0 %v1801
    %1820 = vmatprep.subr.mxu0 0.0
    %1821 = vmatpush1.msra.mxu0 %v1802
    %1822 = vmatprep.subr.mxu0 0.0
    %1823 = vmatpush1.msra.mxu0 %v1803
    %1824 = vmatprep.subr.mxu0 0.0
    %1825 = vmatpush1.msra.mxu0 %v1804
    %1826 = vmatprep.subr.mxu0 0.0
    %1827 = vmatpush1.msra.mxu0 0.0
    %1828 = vmatprep.subr.mxu0 0.0
    %1829 = vmatpush1.msra.mxu0 0.0
    %1830 = vmatprep.subr.mxu0 0.0
    %1831 = vmatpush1.msra.mxu0 0.0
    %1832 = vmatprep.subr.mxu0 0.0
    %1833 = vmatpush1.msra.mxu0 0.0
    %1834 = vmatprep.subr.mxu0 0.0
    %1835 = vmatpush1.msra.mxu0 0.0
    %1836 = vmatprep.subr.mxu0 0.0
    %1837 = vmatpush1.msra.mxu0 0.0
    %1838 = vmatprep.subr.mxu0 0.0
    %1839 = vmatpush1.msra.mxu0 0.0
    %1840 = vmatprep.subr.mxu0 0.0
    %1841 = vmatpush1.msra.mxu0 0.0
    %1842 = vmatprep.subr.mxu0 0.0
    %1843 = vmatpush1.msra.mxu0 0.0
    %1844 = vmatprep.subr.mxu0 0.0
    %1845 = vmatpush1.msra.mxu0 0.0
    %1846 = vmatprep.subr.mxu0 0.0
    %1847 = vmatpush1.msra.mxu0 0.0
    %1848 = vmatprep.subr.mxu0 0.0
    %1849 = vmatpush1.msra.mxu0 0.0
    %1850 = vmatprep.subr.mxu0 0.0
    %1851 = vmatpush1.msra.mxu0 0.0
    %1852 = vmatprep.subr.mxu0 0.0
    %1853 = vmatpush1.msra.mxu0 0.0
    %1854 = vmatprep.subr.mxu0 0.0
    %1855 = vmatpush1.msra.mxu0 0.0
    %1856 = vmatprep.subr.mxu0 0.0
    %1857 = vmatpush1.msra.mxu0 0.0
    %1858 = vmatprep.subr.mxu0 0.0
    %1859 = vmatpush1.msra.mxu0 0.0
    %1860 = vmatprep.subr.mxu0 0.0
    %1861 = vmatpush1.msra.mxu0 0.0
    %1862 = vmatprep.subr.mxu0 0.0
    %1863 = vmatpush1.msra.mxu0 0.0
    %1864 = vmatprep.subr.mxu0 0.0
    %1865 = vmatpush1.msra.mxu0 0.0
    %1866 = vmatprep.subr.mxu0 0.0
    %1867 = vmatpush1.msra.mxu0 0.0
    %1868 = vmatprep.subr.mxu0 0.0
    %1869 = vmatpush1.msra.mxu0 0.0
    %1870 = vmatprep.subr.mxu0 0.0
    %1871 = vmatpush1.msra.mxu0 0.0
    %1872 = vmatprep.subr.mxu0 0.0
    %1873 = vmatpush1.msra.mxu0 0.0
    %1874 = vmatprep.subr.mxu0 0.0
    %1875 = vmatpush1.msra.mxu0 0.0
    %1876 = vmatprep.subr.mxu0 0.0
    %1877 = vmatpush1.msra.mxu0 0.0
    %1878 = vmatprep.subr.mxu0 0.0
    %1879 = vmatpush1.msra.mxu0 0.0
    %1880 = vmatprep.subr.mxu0 0.0
    %1881 = vmatpush1.msra.mxu0 0.0
    %1882 = vmatprep.mubr.f32.mxu0 0.0
    %1883 = vmatmul.mubr.f32.gmra.mrb[0].mxu0 %v1813
    %v1884 = vpop.f32.mrb[0].mxu0
    %v1885 = vadd.f32 %v1810, %v1884
    %v1886 = vpop.f32.mrb[0].mxu0
    %1887 = vmatprep.mubr.f32.mxu0 0.0
    %1888 = vmatmul.mubr.f32.gmra.mrb[0].mxu0 %v1816
    %v1889 = vpop.f32.mrb[0].mxu0
    %v1890 = vadd.f32 %v1810, %v1889
    %v1891 = vpop.f32.mrb[0].mxu0
    %1892 = vdwg.mxu0
    %v1893 = vmax.f32 %v1885, 0.0
    %v1894 = vmax.f32 %v1890, 0.0
    %v1895 = vld [vmem:[%s10] sm:$0xff]
    %v1896 = vld [vmem:[%s10 + $0x8] sm:$0xff]
    %v1897 = vld [vmem:[%s10 + $0x10] sm:$0xff]
    %v1898 = vld [vmem:[%s10 + $0x18] sm:$0xff]
    %v1899 = vld [vmem:[%s11] sm:$0x1]
    %v1901 = vlaneseq
    %v1902 = vshrl.u32 %v1901, 7
    %v1903 = vsub.s32 0, %v1902
    %v1904 = vrot.slane %v1899, %v1903
    %v1907 = vsel %vm115, %v1893, 0
    %v1910 = vsel %vm115, %v1894, 0
    %1912 = vmatprep.subr.mxu0 0.0
    %1913 = vmatpush1.msra.mxu0 %v1895
    %1914 = vmatprep.subr.mxu0 0.0
    %1915 = vmatpush1.msra.mxu0 %v1896
    %1916 = vmatprep.subr.mxu0 0.0
    %1917 = vmatpush1.msra.mxu0 %v1897
    %1918 = vmatprep.subr.mxu0 0.0
    %1919 = vmatpush1.msra.mxu0 %v1898
    %1920 = vmatprep.subr.mxu0 0.0
    %1921 = vmatpush1.msra.mxu0 0.0
    %1922 = vmatprep.subr.mxu0 0.0
    %1923 = vmatpush1.msra.mxu0 0.0
    %1924 = vmatprep.subr.mxu0 0.0
    %1925 = vmatpush1.msra.mxu0 0.0
    %1926 = vmatprep.subr.mxu0 0.0
    %1927 = vmatpush1.msra.mxu0 0.0
    %1928 = vmatprep.subr.mxu0 0.0
    %1929 = vmatpush1.msra.mxu0 0.0
    %1930 = vmatprep.subr.mxu0 0.0
    %1931 = vmatpush1.msra.mxu0 0.0
    %1932 = vmatprep.subr.mxu0 0.0
    %1933 = vmatpush1.msra.mxu0 0.0
    %1934 = vmatprep.subr.mxu0 0.0
    %1935 = vmatpush1.msra.mxu0 0.0
    %1936 = vmatprep.subr.mxu0 0.0
    %1937 = vmatpush1.msra.mxu0 0.0
    %1938 = vmatprep.subr.mxu0 0.0
    %1939 = vmatpush1.msra.mxu0 0.0
    %1940 = vmatprep.subr.mxu0 0.0
    %1941 = vmatpush1.msra.mxu0 0.0
    %1942 = vmatprep.subr.mxu0 0.0
    %1943 = vmatpush1.msra.mxu0 0.0
    %1944 = vmatprep.subr.mxu0 0.0
    %1945 = vmatpush1.msra.mxu0 0.0
    %1946 = vmatprep.subr.mxu0 0.0
    %1947 = vmatpush1.msra.mxu0 0.0
    %1948 = vmatprep.subr.mxu0 0.0
    %1949 = vmatpush1.msra.mxu0 0.0
    %1950 = vmatprep.subr.mxu0 0.0
    %1951 = vmatpush1.msra.mxu0 0.0
    %1952 = vmatprep.subr.mxu0 0.0
    %1953 = vmatpush1.msra.mxu0 0.0
    %1954 = vmatprep.subr.mxu0 0.0
    %1955 = vmatpush1.msra.mxu0 0.0
    %1956 = vmatprep.subr.mxu0 0.0
    %1957 = vmatpush1.msra.mxu0 0.0
    %1958 = vmatprep.subr.mxu0 0.0
    %1959 = vmatpush1.msra.mxu0 0.0
    %1960 = vmatprep.subr.mxu0 0.0
    %1961 = vmatpush1.msra.mxu0 0.0
    %1962 = vmatprep.subr.mxu0 0.0
    %1963 = vmatpush1.msra.mxu0 0.0
    %1964 = vmatprep.subr.mxu0 0.0
    %1965 = vmatpush1.msra.mxu0 0.0
    %1966 = vmatprep.subr.mxu0 0.0
    %1967 = vmatpush1.msra.mxu0 0.0
    %1968 = vmatprep.subr.mxu0 0.0
    %1969 = vmatpush1.msra.mxu0 0.0
    %1970 = vmatprep.subr.mxu0 0.0
    %1971 = vmatpush1.msra.mxu0 0.0
    %1972 = vmatprep.subr.mxu0 0.0
    %1973 = vmatpush1.msra.mxu0 0.0
    %1974 = vmatprep.subr.mxu0 0.0
    %1975 = vmatpush1.msra.mxu0 0.0
    %1976 = vmatprep.mubr.f32.mxu0 0.0
    %1977 = vmatmul.mubr.f32.gmra.mrb[0].mxu0 %v1907
    %v1978 = vpop.f32.mrb[0].mxu0
    %v1979 = vadd.f32 %v1904, %v1978
    %v1980 = vpop.f32.mrb[0].mxu0
    %1981 = vmatprep.mubr.f32.mxu0 0.0
    %1982 = vmatmul.mubr.f32.gmra.mrb[0].mxu0 %v1910
    %v1983 = vpop.f32.mrb[0].mxu0
    %v1984 = vadd.f32 %v1904, %v1983
    %v1985 = vpop.f32.mrb[0].mxu0
    %1986 = vdwg.mxu0
    %v1987 = vadd.f32 %v1799, %v1979
    %v1988 = vadd.f32 %v1800, %v1984
    %1989 = vst.msk [vmem:[#allocation11] sm:$0xff] %vm115, %v1987
    %1991 = vrot.lane.b32.xlu0 %v1988, 32
    %v1992 = vpop.permute.xlu0 %1991
    %vm1994 = vcmask 523520
    %1995 = vst.msk [vmem:[#allocation11] sm:$0xff] %vm1994, %v1992
    // Predicated region
    $region70: #{tpu_custom_call.1} parent=1 // pred_check
      _
    $region71: #{tpu_custom_call.1} parent=1 // pred_check_branch
      %1997 = sbr.rel (0) target = $region73
    $region72: #{tpu_custom_call.1} parent=1 // pred_region
      %s1999 = ssub.s32 128, 128
      %2000 = vsyncadd [#allocation4], %s1999
      %s2002 = sshll.u32 [#allocation11], 4
      %s2003 = int_to_ptr.vmem [resolvable:$true] %s2002
      %2005 = dma.vmem_to_hbm [thread:$0]  %s2003, 128, %s12, [#allocation4]
    $region73: #{tpu_custom_call.1} parent=1 // pred_fallthru
      _
    // Predicated region
    $region74: #{tpu_custom_call.1} parent=1 // pred_check
      _
    $region75: #{tpu_custom_call.1} parent=1 // pred_check_branch
      %2007 = sbr.rel (0) target = $region77
    $region76: #{tpu_custom_call.1} parent=1 // pred_region
      %2008 = dma.done [#allocation4], 128
    $region77: #{tpu_custom_call.1} parent=1 // pred_fallthru
      _
    %2009 = vsyncpa [#allocation3], 1
    %2010 = vsyncpa [#allocation6], 1
    %2011 = vsyncpa [#allocation9], 1
    %2012 = vsyncpa [#allocation4], 1

</llo_original>
